<compile_context>
chip_gen: v6e
topology: v6e:2x2x1
jax: 0.10.0
libtpu: 0.0.40
codegen_flags: <defaults>
</compile_context>

<pallas_src>
import functools
import math

import jax
import jax.numpy as jnp
from jax.experimental import pallas as pl
from jax.experimental.pallas import tpu as pltpu


# ---------------------------------------------------------------------------
# Pass 1: conv1 (1x1 + bias) -> xi ; relu(conv2 3x3 + bias) ; conv3 3x3 + bias
#         -> c ; per-batch-tile sum / sum-of-squares of c (for BN statistics).
# ---------------------------------------------------------------------------
def _pass1_kernel(x_ref, w1_ref, b1_ref, w2_ref, b2_ref, w3_ref, b3_ref,
                  xi_ref, c_ref, stats_ref, pad_ref, *, tn, h):
    rows, wc = xi_ref.shape                 # rows = tn*H, wc = W*Cout (lane axis)

    # Zero only the two H-padding border rows; the interior rows 1..h are fully
    # overwritten by each conv3x3 call below (no full-buffer re-zeroing).
    border = jnp.zeros((tn, 1, wc), pad_ref.dtype)
    pad_ref[:, 0:1, :] = border
    pad_ref[:, h + 1:h + 2, :] = border

    # conv1 (1x1 + bias): one lane-dense bf16 matmul, f32 accumulation.
    xi = jnp.dot(x_ref[...], w1_ref[...],
                 preferred_element_type=jnp.float32) + b1_ref[...]
    xi_ref[...] = xi

    def conv3x3(a, w_ref, bias):
        # H-padded f32 scratch; the W-taps and the W zero-padding are folded
        # into the banded (W*C, W*C) weights, so only 3 matmuls (one per H-tap).
        pad_ref[:, 1:h + 1, :] = a.reshape(tn, h, wc)
        acc = jnp.zeros((rows, wc), jnp.float32)
        for dh in range(3):
            taps = pad_ref[:, dh:dh + h, :].reshape(rows, wc)
            acc = acc + jnp.dot(taps.astype(jnp.bfloat16), w_ref[dh],
                                preferred_element_type=jnp.float32)
        return acc + bias

    a = jnp.maximum(conv3x3(xi, w2_ref, b2_ref[...]), 0.0)
    c = conv3x3(a, w3_ref, b3_ref[...])
    c_ref[...] = c

    # Per-tile BN partials: row 0 = sum(c), row 1 = sum(c*c), rows 2..7 padding
    # (never read by the wrapper).  Full-block store keeps it lane/sublane dense.
    s = jnp.concatenate([jnp.sum(c, axis=0, keepdims=True),
                         jnp.sum(c * c, axis=0, keepdims=True),
                         jnp.zeros((6, wc), jnp.float32)], axis=0)
    stats_ref[...] = s.reshape(1, 8, wc)


# ---------------------------------------------------------------------------
# Pass 2: BN (pre-folded scale/shift) + residual + ReLU + optional 2x2 maxpool.
# ---------------------------------------------------------------------------
def _pass2_kernel(xi_ref, c_ref, scale_ref, shift_ref, o_ref, *, maxpool, ch):
    y = jnp.maximum(c_ref[...] * scale_ref[...] + shift_ref[...] + xi_ref[...],
                    0.0)
    if not maxpool:
        o_ref[...] = y
    else:
        rows, wc = y.shape
        # 2x2 / stride-2 max pool, fully vectorized, single output store:
        # H-pool = pairwise row max, W-pool = pairwise channel-block max.
        hmax = jnp.max(y.reshape(rows // 2, 2, wc), axis=1)
        wmax = jnp.max(hmax.reshape(rows // 2, wc // (2 * ch), 2, ch), axis=2)
        o_ref[...] = wmax.reshape(rows // 2, wc // 2)


# ---------------------------------------------------------------------------
# Wrapper: weight preprocessing (banded matrices), grid/BlockSpec setup,
#          BN-statistic reduction between the two passes.
# ---------------------------------------------------------------------------
def _banded_conv3x3_weights(w9, width):
    """w9: (9, Cin, Cout), tap index dh*3+dw -> (3, W*Cin, W*Cout) banded mats."""
    bands = []
    for dh in range(3):
        b = None
        for dw in range(3):
            t = jnp.kron(jnp.eye(width, k=1 - dw, dtype=jnp.float32),
                         w9[dh * 3 + dw])
            b = t if b is None else b + t
        bands.append(b)
    return jnp.stack(bands, axis=0)


def res_layer_forward(x_nchw, params, *, maxpool=False, eps=1e-5, block_n=1):
    """Pallas ResLayer forward. Input/output are NCHW (PyTorch convention)."""
    w1, b1, w2, b2, w3, b3, gamma, beta = params
    x = jnp.transpose(x_nchw, (0, 2, 3, 1)).astype(jnp.float32)   # NCHW -> NHWC
    n, hh, ww, cin = x.shape
    cout = w1.shape[1]
    assert n % block_n == 0 and hh % 2 == 0 and ww % 2 == 0
    assert (block_n * hh) % 8 == 0, "batch-tile row count must be sublane aligned"
    wc_in, wc = ww * cin, ww * cout
    rows_t = block_n * hh
    grid_n = n // block_n

    # Lane-dense operands; activations / MXU weights in bf16.
    x2d = x.reshape(n * hh, wc_in).astype(jnp.bfloat16)
    w1_big = jnp.kron(jnp.eye(ww, dtype=jnp.float32), w1).astype(jnp.bfloat16)
    w2_big = _banded_conv3x3_weights(w2, ww).astype(jnp.bfloat16)
    w3_big = _banded_conv3x3_weights(w3, ww).astype(jnp.bfloat16)
    b1_big = jnp.tile(b1.reshape(-1), ww).reshape(1, wc)
    b2_big = jnp.tile(b2.reshape(-1), ww).reshape(1, wc)
    b3_big = jnp.tile(b3.reshape(-1), ww).reshape(1, wc)

    cparams = pltpu.CompilerParams(
        dimension_semantics=("parallel",),       # multi-TC chips split the grid
        vmem_limit_bytes=32 * 1024 * 1024)       # explicit budget, safe v5e-v7x

    # ----- pass 1 -----
    xi2d, c2d, stats = pl.pallas_call(
        functools.partial(_pass1_kernel, tn=block_n, h=hh),
        grid=(grid_n,),
        in_specs=[
            pl.BlockSpec((rows_t, wc_in), lambda i: (i, 0)),      # x tile
            pl.BlockSpec((wc_in, wc), lambda i: (0, 0)),          # conv1 weights
            pl.BlockSpec((1, wc), lambda i: (0, 0)),              # b1
            pl.BlockSpec((3, wc, wc), lambda i: (0, 0, 0)),       # conv2 bands
            pl.BlockSpec((1, wc), lambda i: (0, 0)),              # b2
            pl.BlockSpec((3, wc, wc), lambda i: (0, 0, 0)),       # conv3 bands
            pl.BlockSpec((1, wc), lambda i: (0, 0)),              # b3
        ],
        out_specs=[
            pl.BlockSpec((rows_t, wc), lambda i: (i, 0)),         # xi
            pl.BlockSpec((rows_t, wc), lambda i: (i, 0)),         # c
            pl.BlockSpec((1, 8, wc), lambda i: (i, 0, 0)),        # per-tile stats
        ],
        out_shape=[
            jax.ShapeDtypeStruct((n * hh, wc), jnp.float32),
            jax.ShapeDtypeStruct((n * hh, wc), jnp.float32),
            jax.ShapeDtypeStruct((grid_n, 8, wc), jnp.float32),
        ],
        scratch_shapes=[pltpu.VMEM((block_n, hh + 2, wc), jnp.float32)],
        compiler_params=cparams,
    )(x2d, w1_big, b1_big, w2_big, b2_big, w3_big, b3_big)

    # ----- BN statistics (tiny cross-tile reduction, done in plain JAX) -----
    cnt = float(n * hh * ww)
    sum_c = stats[:, 0, :].sum(axis=0).reshape(ww, cout).sum(axis=0)
    sum_sq = stats[:, 1, :].sum(axis=0).reshape(ww, cout).sum(axis=0)
    mean = sum_c / cnt
    var = jnp.maximum(sum_sq / cnt - mean * mean, 0.0)   # biased variance
    inv_std = jax.lax.rsqrt(var + eps)
    scale = gamma.reshape(-1) * inv_std
    shift = beta.reshape(-1) - mean * scale
    scale_big = jnp.tile(scale, ww).reshape(1, wc)
    shift_big = jnp.tile(shift, ww).reshape(1, wc)

    # ----- pass 2 -----
    ho, wo = (hh // 2, ww // 2) if maxpool else (hh, ww)
    out_rows_t = rows_t // 2 if maxpool else rows_t
    out_wc = wo * cout

    y2d = pl.pallas_call(
        functools.partial(_pass2_kernel, maxpool=maxpool, ch=cout),
        grid=(grid_n,),
        in_specs=[
            pl.BlockSpec((rows_t, wc), lambda i: (i, 0)),         # xi tile
            pl.BlockSpec((rows_t, wc), lambda i: (i, 0)),         # c tile
            pl.BlockSpec((1, wc), lambda i: (0, 0)),              # BN scale
            pl.BlockSpec((1, wc), lambda i: (0, 0)),              # BN shift
        ],
        out_specs=pl.BlockSpec((out_rows_t, out_wc), lambda i: (i, 0)),
        out_shape=jax.ShapeDtypeStruct((n * ho, out_wc), jnp.float32),
        compiler_params=cparams,
    )(xi2d, c2d, scale_big, shift_big)

    y = y2d.reshape(n, ho, wo, cout)
    return jnp.transpose(y, (0, 3, 1, 2))                          # NHWC -> NCHW


# ---------------------------------------------------------------------------
# Pure-JAX reference (independent of the banded-matmul formulation).
# ---------------------------------------------------------------------------
def res_layer_ref(x_nchw, params, *, maxpool=False, eps=1e-5):
    w1, b1, w2, b2, w3, b3, gamma, beta = params
    x = jnp.transpose(x_nchw, (0, 2, 3, 1)).astype(jnp.float32)
    n, hh, ww, cin = x.shape
    cout = w1.shape[1]
    dn = ('NHWC', 'HWIO', 'NHWC')

    def conv(inp, w_hwio, b, pad):
        out = jax.lax.conv_general_dilated(inp, w_hwio, (1, 1), pad,
                                           dimension_numbers=dn)
        return out + b.reshape(1, 1, 1, -1)

    xi = conv(x, w1.reshape(1, 1, cin, cout), b1, 'VALID')
    a = jax.nn.relu(conv(xi, w2.reshape(3, 3, cout, cout), b2, 'SAME'))
    c = conv(a, w3.reshape(3, 3, cout, cout), b3, 'SAME')
    mean = jnp.mean(c, axis=(0, 1, 2))
    var = jnp.mean((c - mean) ** 2, axis=(0, 1, 2))
    bn = (c - mean) * jax.lax.rsqrt(var + eps) * gamma.reshape(-1) + beta.reshape(-1)
    y = jax.nn.relu(bn + xi)
    if maxpool:
        y = y.reshape(n, hh // 2, 2, ww // 2, 2, cout).max(axis=(2, 4))
    return jnp.transpose(y, (0, 3, 1, 2))


def make_params(key, in_channels, out_channels):
    ks = jax.random.split(key, 8)
    s1 = 1.0 / math.sqrt(in_channels)
    s3 = 1.0 / math.sqrt(9 * out_channels)
    w1 = s1 * jax.random.normal(ks[0], (in_channels, out_channels), jnp.float32)
    b1 = 0.1 * jax.random.normal(ks[1], (1, out_channels), jnp.float32)
    w2 = s3 * jax.random.normal(ks[2], (9, out_channels, out_channels), jnp.float32)
    b2 = 0.1 * jax.random.normal(ks[3], (1, out_channels), jnp.float32)
    w3 = s3 * jax.random.normal(ks[4], (9, out_channels, out_channels), jnp.float32)
    b3 = 0.1 * jax.random.normal(ks[5], (1, out_channels), jnp.float32)
    gamma = 1.0 + 0.1 * jax.random.normal(ks[6], (1, out_channels), jnp.float32)
    beta = 0.1 * jax.random.normal(ks[7], (1, out_channels), jnp.float32)
    return (w1, b1, w2, b2, w3, b3, gamma, beta)


if __name__ == "__main__":
    key = jax.random.PRNGKey(0)
    k_x, k_p = jax.random.split(key)

    N, Cin, Cout, H, W = 2, 4, 8, 16, 16
    x = jax.random.normal(k_x, (N, Cin, H, W), jnp.float32)  # NCHW, like PyTorch
    params = make_params(k_p, Cin, Cout)

    for mp in (False, True):
        fwd = jax.jit(functools.partial(res_layer_forward, maxpool=mp))
        y = jax.block_until_ready(fwd(x, params))
        y_ref = res_layer_ref(x, params, maxpool=mp)
        err = float(jnp.max(jnp.abs(y - y_ref)))
        # bf16 MXU operands (f32 accumulation) -> slightly looser tolerance
        # than the pure-f32 reference.
        if not jnp.allclose(y, y_ref, atol=5e-2, rtol=5e-2):
            raise AssertionError(f"mismatch vs reference (maxpool={mp}), max err {err}")

    print("KERNEL_OK")
</pallas_src>

<mosaic_0001>
module attributes {stable_mosaic.version = 11 : i64} {
  func.func @_pass1_kernel(%arg0: i32, %arg1: memref<16x64xbf16, #tpu.memory_space<vmem>>, %arg2: memref<64x128xbf16, #tpu.memory_space<vmem>>, %arg3: memref<1x128xf32, #tpu.memory_space<vmem>>, %arg4: memref<3x128x128xbf16, #tpu.memory_space<vmem>>, %arg5: memref<1x128xf32, #tpu.memory_space<vmem>>, %arg6: memref<3x128x128xbf16, #tpu.memory_space<vmem>>, %arg7: memref<1x128xf32, #tpu.memory_space<vmem>>, %arg8: memref<16x128xf32, #tpu.memory_space<vmem>>, %arg9: memref<16x128xf32, #tpu.memory_space<vmem>>, %arg10: memref<1x8x128xf32, #tpu.memory_space<vmem>>, %arg11: memref<1x18x128xf32, #tpu.memory_space<vmem>>) attributes {dimension_semantics = [#tpu.dimension_semantics<parallel>], iteration_bounds = array<i64: 2>, scalar_prefetch = 0 : i64, scratch_operands = 1 : i64, tpu.core_type = #tpu.core_type<tc>, window_params = [{transform_indices = @transform_0, window_bounds = array<i64: 16, 64>}, {pipeline_mode = #tpu.pipeline_mode<synchronous>, transform_indices = @transform_1, window_bounds = array<i64: 64, 128>}, {pipeline_mode = #tpu.pipeline_mode<synchronous>, transform_indices = @transform_2, window_bounds = array<i64: 1, 128>}, {pipeline_mode = #tpu.pipeline_mode<synchronous>, transform_indices = @transform_3, window_bounds = array<i64: 3, 128, 128>}, {pipeline_mode = #tpu.pipeline_mode<synchronous>, transform_indices = @transform_4, window_bounds = array<i64: 1, 128>}, {pipeline_mode = #tpu.pipeline_mode<synchronous>, transform_indices = @transform_5, window_bounds = array<i64: 3, 128, 128>}, {pipeline_mode = #tpu.pipeline_mode<synchronous>, transform_indices = @transform_6, window_bounds = array<i64: 1, 128>}, {transform_indices = @transform_7, window_bounds = array<i64: 16, 128>}, {transform_indices = @transform_8, window_bounds = array<i64: 16, 128>}, {transform_indices = @transform_9, window_bounds = array<i64: 1, 8, 128>}]} {
    %cst = arith.constant 0.000000e+00 : f32
    %0 = vector.broadcast %cst : f32 to vector<1x1x128xf32>
    %c0 = arith.constant 0 : index
    %c0_0 = arith.constant 0 : index
    %c0_1 = arith.constant 0 : index
    %1 = vector.load %arg11[%c0, %c0_0, %c0_1] : memref<1x18x128xf32, #tpu.memory_space<vmem>>, vector<1x1x128xf32>
    tpu.vector_store %arg11[%c0, %c0_0, %c0_1], %0 {strides = array<i32>} : memref<1x18x128xf32, #tpu.memory_space<vmem>>, vector<1x1x128xf32>,
    %c0_2 = arith.constant 0 : index
    %c17 = arith.constant 17 : index
    %c0_3 = arith.constant 0 : index
    %2 = vector.load %arg11[%c0_2, %c17, %c0_3] : memref<1x18x128xf32, #tpu.memory_space<vmem>>, vector<1x1x128xf32>
    tpu.vector_store %arg11[%c0_2, %c17, %c0_3], %0 {strides = array<i32>} : memref<1x18x128xf32, #tpu.memory_space<vmem>>, vector<1x1x128xf32>,
    %c0_4 = arith.constant 0 : index
    %c0_5 = arith.constant 0 : index
    %3 = vector.load %arg1[%c0_4, %c0_5] : memref<16x64xbf16, #tpu.memory_space<vmem>>, vector<16x64xbf16>
    %c0_6 = arith.constant 0 : index
    %c0_7 = arith.constant 0 : index
    %4 = vector.load %arg2[%c0_6, %c0_7] : memref<64x128xbf16, #tpu.memory_space<vmem>>, vector<64x128xbf16>
    %cst_8 = arith.constant dense<0.000000e+00> : vector<16x128xf32>
    %5 = tpu.matmul %3, %4, %cst_8 {dimension_numbers = #tpu.dot_dimension_numbers<[1], [0], [0], [1], [0, 0, 1, 1], [], []>} : vector<16x64xbf16>, vector<64x128xbf16>, vector<16x128xf32> -> vector<16x128xf32>
    %c0_9 = arith.constant 0 : index
    %c0_10 = arith.constant 0 : index
    %6 = vector.load %arg3[%c0_9, %c0_10] : memref<1x128xf32, #tpu.memory_space<vmem>>, vector<1x128xf32>
    %7 = vector.broadcast %6 : vector<1x128xf32> to vector<16x128xf32>
    %8 = arith.addf %5, %7 : vector<16x128xf32>
    %c0_11 = arith.constant 0 : index
    %c0_12 = arith.constant 0 : index
    %9 = vector.load %arg8[%c0_11, %c0_12] : memref<16x128xf32, #tpu.memory_space<vmem>>, vector<16x128xf32>
    tpu.vector_store %arg8[%c0_11, %c0_12], %8 {strides = array<i32>} : memref<16x128xf32, #tpu.memory_space<vmem>>, vector<16x128xf32>,
    %c0_13 = arith.constant 0 : index
    %c0_14 = arith.constant 0 : index
    %10 = vector.load %arg5[%c0_13, %c0_14] : memref<1x128xf32, #tpu.memory_space<vmem>>, vector<1x128xf32>
    %11 = vector.shape_cast %8 : vector<16x128xf32> to vector<1x16x128xf32>
    %c0_15 = arith.constant 0 : index
    %c1 = arith.constant 1 : index
    %c0_16 = arith.constant 0 : index
    %12 = vector.load %arg11[%c0_15, %c1, %c0_16] : memref<1x18x128xf32, #tpu.memory_space<vmem>>, vector<1x16x128xf32>
    tpu.vector_store %arg11[%c0_15, %c1, %c0_16], %11 {strides = array<i32>} : memref<1x18x128xf32, #tpu.memory_space<vmem>>, vector<1x16x128xf32>,
    %cst_17 = arith.constant 0.000000e+00 : f32
    %13 = vector.broadcast %cst_17 : f32 to vector<16x128xf32>
    %c0_18 = arith.constant 0 : index
    %c0_19 = arith.constant 0 : index
    %c0_20 = arith.constant 0 : index
    %14 = vector.load %arg11[%c0_18, %c0_19, %c0_20] : memref<1x18x128xf32, #tpu.memory_space<vmem>>, vector<1x16x128xf32>
    %15 = vector.shape_cast %14 : vector<1x16x128xf32> to vector<16x128xf32>
    %16 = arith.truncf %15 : vector<16x128xf32> to vector<16x128xbf16>
    %c0_21 = arith.constant 0 : index
    %c0_22 = arith.constant 0 : index
    %c0_23 = arith.constant 0 : index
    %17 = vector.load %arg4[%c0_21, %c0_22, %c0_23] : memref<3x128x128xbf16, #tpu.memory_space<vmem>>, vector<1x128x128xbf16>
    %18 = vector.shape_cast %17 : vector<1x128x128xbf16> to vector<128x128xbf16>
    %cst_24 = arith.constant dense<0.000000e+00> : vector<16x128xf32>
    %19 = tpu.matmul %16, %18, %cst_24 {dimension_numbers = #tpu.dot_dimension_numbers<[1], [0], [0], [1], [0, 0, 1, 1], [], []>} : vector<16x128xbf16>, vector<128x128xbf16>, vector<16x128xf32> -> vector<16x128xf32>
    %20 = arith.addf %13, %19 : vector<16x128xf32>
    %c0_25 = arith.constant 0 : index
    %c1_26 = arith.constant 1 : index
    %c0_27 = arith.constant 0 : index
    %21 = vector.load %arg11[%c0_25, %c1_26, %c0_27] : memref<1x18x128xf32, #tpu.memory_space<vmem>>, vector<1x16x128xf32>
    %22 = vector.shape_cast %21 : vector<1x16x128xf32> to vector<16x128xf32>
    %23 = arith.truncf %22 : vector<16x128xf32> to vector<16x128xbf16>
    %c1_28 = arith.constant 1 : index
    %c0_29 = arith.constant 0 : index
    %c0_30 = arith.constant 0 : index
    %24 = vector.load %arg4[%c1_28, %c0_29, %c0_30] : memref<3x128x128xbf16, #tpu.memory_space<vmem>>, vector<1x128x128xbf16>
    %25 = vector.shape_cast %24 : vector<1x128x128xbf16> to vector<128x128xbf16>
    %cst_31 = arith.constant dense<0.000000e+00> : vector<16x128xf32>
    %26 = tpu.matmul %23, %25, %cst_31 {dimension_numbers = #tpu.dot_dimension_numbers<[1], [0], [0], [1], [0, 0, 1, 1], [], []>} : vector<16x128xbf16>, vector<128x128xbf16>, vector<16x128xf32> -> vector<16x128xf32>
    %27 = arith.addf %20, %26 : vector<16x128xf32>
    %c0_32 = arith.constant 0 : index
    %c2 = arith.constant 2 : index
    %c0_33 = arith.constant 0 : index
    %28 = vector.load %arg11[%c0_32, %c2, %c0_33] : memref<1x18x128xf32, #tpu.memory_space<vmem>>, vector<1x16x128xf32>
    %29 = vector.shape_cast %28 : vector<1x16x128xf32> to vector<16x128xf32>
    %30 = arith.truncf %29 : vector<16x128xf32> to vector<16x128xbf16>
    %c2_34 = arith.constant 2 : index
    %c0_35 = arith.constant 0 : index
    %c0_36 = arith.constant 0 : index
    %31 = vector.load %arg4[%c2_34, %c0_35, %c0_36] : memref<3x128x128xbf16, #tpu.memory_space<vmem>>, vector<1x128x128xbf16>
    %32 = vector.shape_cast %31 : vector<1x128x128xbf16> to vector<128x128xbf16>
    %cst_37 = arith.constant dense<0.000000e+00> : vector<16x128xf32>
    %33 = tpu.matmul %30, %32, %cst_37 {dimension_numbers = #tpu.dot_dimension_numbers<[1], [0], [0], [1], [0, 0, 1, 1], [], []>} : vector<16x128xbf16>, vector<128x128xbf16>, vector<16x128xf32> -> vector<16x128xf32>
    %34 = arith.addf %27, %33 : vector<16x128xf32>
    %35 = vector.broadcast %10 : vector<1x128xf32> to vector<16x128xf32>
    %36 = arith.addf %34, %35 : vector<16x128xf32>
    %cst_38 = arith.constant 0.000000e+00 : f32
    %37 = vector.broadcast %cst_38 : f32 to vector<16x128xf32>
    %38 = arith.maximumf %36, %37 : vector<16x128xf32>
    %c0_39 = arith.constant 0 : index
    %c0_40 = arith.constant 0 : index
    %39 = vector.load %arg7[%c0_39, %c0_40] : memref<1x128xf32, #tpu.memory_space<vmem>>, vector<1x128xf32>
    %40 = vector.shape_cast %38 : vector<16x128xf32> to vector<1x16x128xf32>
    %c0_41 = arith.constant 0 : index
    %c1_42 = arith.constant 1 : index
    %c0_43 = arith.constant 0 : index
    %41 = vector.load %arg11[%c0_41, %c1_42, %c0_43] : memref<1x18x128xf32, #tpu.memory_space<vmem>>, vector<1x16x128xf32>
    tpu.vector_store %arg11[%c0_41, %c1_42, %c0_43], %40 {strides = array<i32>} : memref<1x18x128xf32, #tpu.memory_space<vmem>>, vector<1x16x128xf32>,
    %cst_44 = arith.constant 0.000000e+00 : f32
    %42 = vector.broadcast %cst_44 : f32 to vector<16x128xf32>
    %c0_45 = arith.constant 0 : index
    %c0_46 = arith.constant 0 : index
    %c0_47 = arith.constant 0 : index
    %43 = vector.load %arg11[%c0_45, %c0_46, %c0_47] : memref<1x18x128xf32, #tpu.memory_space<vmem>>, vector<1x16x128xf32>
    %44 = vector.shape_cast %43 : vector<1x16x128xf32> to vector<16x128xf32>
    %45 = arith.truncf %44 : vector<16x128xf32> to vector<16x128xbf16>
    %c0_48 = arith.constant 0 : index
    %c0_49 = arith.constant 0 : index
    %c0_50 = arith.constant 0 : index
    %46 = vector.load %arg6[%c0_48, %c0_49, %c0_50] : memref<3x128x128xbf16, #tpu.memory_space<vmem>>, vector<1x128x128xbf16>
    %47 = vector.shape_cast %46 : vector<1x128x128xbf16> to vector<128x128xbf16>
    %cst_51 = arith.constant dense<0.000000e+00> : vector<16x128xf32>
    %48 = tpu.matmul %45, %47, %cst_51 {dimension_numbers = #tpu.dot_dimension_numbers<[1], [0], [0], [1], [0, 0, 1, 1], [], []>} : vector<16x128xbf16>, vector<128x128xbf16>, vector<16x128xf32> -> vector<16x128xf32>
    %49 = arith.addf %42, %48 : vector<16x128xf32>
    %c0_52 = arith.constant 0 : index
    %c1_53 = arith.constant 1 : index
    %c0_54 = arith.constant 0 : index
    %50 = vector.load %arg11[%c0_52, %c1_53, %c0_54] : memref<1x18x128xf32, #tpu.memory_space<vmem>>, vector<1x16x128xf32>
    %51 = vector.shape_cast %50 : vector<1x16x128xf32> to vector<16x128xf32>
    %52 = arith.truncf %51 : vector<16x128xf32> to vector<16x128xbf16>
    %c1_55 = arith.constant 1 : index
    %c0_56 = arith.constant 0 : index
    %c0_57 = arith.constant 0 : index
    %53 = vector.load %arg6[%c1_55, %c0_56, %c0_57] : memref<3x128x128xbf16, #tpu.memory_space<vmem>>, vector<1x128x128xbf16>
    %54 = vector.shape_cast %53 : vector<1x128x128xbf16> to vector<128x128xbf16>
    %cst_58 = arith.constant dense<0.000000e+00> : vector<16x128xf32>
    %55 = tpu.matmul %52, %54, %cst_58 {dimension_numbers = #tpu.dot_dimension_numbers<[1], [0], [0], [1], [0, 0, 1, 1], [], []>} : vector<16x128xbf16>, vector<128x128xbf16>, vector<16x128xf32> -> vector<16x128xf32>
    %56 = arith.addf %49, %55 : vector<16x128xf32>
    %c0_59 = arith.constant 0 : index
    %c2_60 = arith.constant 2 : index
    %c0_61 = arith.constant 0 : index
    %57 = vector.load %arg11[%c0_59, %c2_60, %c0_61] : memref<1x18x128xf32, #tpu.memory_space<vmem>>, vector<1x16x128xf32>
    %58 = vector.shape_cast %57 : vector<1x16x128xf32> to vector<16x128xf32>
    %59 = arith.truncf %58 : vector<16x128xf32> to vector<16x128xbf16>
    %c2_62 = arith.constant 2 : index
    %c0_63 = arith.constant 0 : index
    %c0_64 = arith.constant 0 : index
    %60 = vector.load %arg6[%c2_62, %c0_63, %c0_64] : memref<3x128x128xbf16, #tpu.memory_space<vmem>>, vector<1x128x128xbf16>
    %61 = vector.shape_cast %60 : vector<1x128x128xbf16> to vector<128x128xbf16>
    %cst_65 = arith.constant dense<0.000000e+00> : vector<16x128xf32>
    %62 = tpu.matmul %59, %61, %cst_65 {dimension_numbers = #tpu.dot_dimension_numbers<[1], [0], [0], [1], [0, 0, 1, 1], [], []>} : vector<16x128xbf16>, vector<128x128xbf16>, vector<16x128xf32> -> vector<16x128xf32>
    %63 = arith.addf %56, %62 : vector<16x128xf32>
    %64 = vector.broadcast %39 : vector<1x128xf32> to vector<16x128xf32>
    %65 = arith.addf %63, %64 : vector<16x128xf32>
    %c0_66 = arith.constant 0 : index
    %c0_67 = arith.constant 0 : index
    %66 = vector.load %arg9[%c0_66, %c0_67] : memref<16x128xf32, #tpu.memory_space<vmem>>, vector<16x128xf32>
    tpu.vector_store %arg9[%c0_66, %c0_67], %65 {strides = array<i32>} : memref<16x128xf32, #tpu.memory_space<vmem>>, vector<16x128xf32>,
    %cst_68 = arith.constant dense<0.000000e+00> : vector<128xf32>
    %67 = vector.multi_reduction <add>, %65, %cst_68 [0] : vector<16x128xf32> to vector<128xf32>
    %68 = vector.shape_cast %67 : vector<128xf32> to vector<1x128xf32>
    %69 = arith.mulf %65, %65 : vector<16x128xf32>
    %cst_69 = arith.constant dense<0.000000e+00> : vector<128xf32>
    %70 = vector.multi_reduction <add>, %69, %cst_69 [0] : vector<16x128xf32> to vector<128xf32>
    %71 = vector.shape_cast %70 : vector<128xf32> to vector<1x128xf32>
    %cst_70 = arith.constant 0.000000e+00 : f32
    %72 = vector.broadcast %cst_70 : f32 to vector<6x128xf32>
    %73 = tpu.concatenate %68, %71, %72 in 0 : vector<1x128xf32>, vector<1x128xf32>, vector<6x128xf32> -> vector<8x128xf32>
    %74 = vector.shape_cast %73 : vector<8x128xf32> to vector<1x8x128xf32>
    %c0_71 = arith.constant 0 : index
    %c0_72 = arith.constant 0 : index
    %c0_73 = arith.constant 0 : index
    %75 = vector.load %arg10[%c0_71, %c0_72, %c0_73] : memref<1x8x128xf32, #tpu.memory_space<vmem>>, vector<1x8x128xf32>
    tpu.vector_store %arg10[%c0_71, %c0_72, %c0_73], %74 {strides = array<i32>} : memref<1x8x128xf32, #tpu.memory_space<vmem>>, vector<1x8x128xf32>,
    return
  }
  func.func @transform_0(%arg0: i32) -> (i32, i32) {
    %c0_i32 = arith.constant 0 : i32
    %c0_i32_0 = arith.constant 0 : i32
    return %arg0, %c0_i32 : i32, i32
  }
  func.func @transform_1(%arg0: i32) -> (i32, i32) {
    %c0_i32 = arith.constant 0 : i32
    %c0_i32_0 = arith.constant 0 : i32
    %c0_i32_1 = arith.constant 0 : i32
    return %c0_i32, %c0_i32_0 : i32, i32
  }
  func.func @transform_2(%arg0: i32) -> (i32, i32) {
    %c0_i32 = arith.constant 0 : i32
    %c0_i32_0 = arith.constant 0 : i32
    %c0_i32_1 = arith.constant 0 : i32
    return %c0_i32, %c0_i32_0 : i32, i32
  }
  func.func @transform_3(%arg0: i32) -> (i32, i32, i32) {
    %c0_i32 = arith.constant 0 : i32
    %c0_i32_0 = arith.constant 0 : i32
    %c0_i32_1 = arith.constant 0 : i32
    %c0_i32_2 = arith.constant 0 : i32
    return %c0_i32, %c0_i32_0, %c0_i32_1 : i32, i32, i32
  }
  func.func @transform_4(%arg0: i32) -> (i32, i32) {
    %c0_i32 = arith.constant 0 : i32
    %c0_i32_0 = arith.constant 0 : i32
    %c0_i32_1 = arith.constant 0 : i32
    return %c0_i32, %c0_i32_0 : i32, i32
  }
  func.func @transform_5(%arg0: i32) -> (i32, i32, i32) {
    %c0_i32 = arith.constant 0 : i32
    %c0_i32_0 = arith.constant 0 : i32
    %c0_i32_1 = arith.constant 0 : i32
    %c0_i32_2 = arith.constant 0 : i32
    return %c0_i32, %c0_i32_0, %c0_i32_1 : i32, i32, i32
  }
  func.func @transform_6(%arg0: i32) -> (i32, i32) {
    %c0_i32 = arith.constant 0 : i32
    %c0_i32_0 = arith.constant 0 : i32
    %c0_i32_1 = arith.constant 0 : i32
    return %c0_i32, %c0_i32_0 : i32, i32
  }
  func.func @transform_7(%arg0: i32) -> (i32, i32) {
    %c0_i32 = arith.constant 0 : i32
    %c0_i32_0 = arith.constant 0 : i32
    return %arg0, %c0_i32 : i32, i32
  }
  func.func @transform_8(%arg0: i32) -> (i32, i32) {
    %c0_i32 = arith.constant 0 : i32
    %c0_i32_0 = arith.constant 0 : i32
    return %arg0, %c0_i32 : i32, i32
  }
  func.func @transform_9(%arg0: i32) -> (i32, i32, i32) {
    %c0_i32 = arith.constant 0 : i32
    %c0_i32_0 = arith.constant 0 : i32
    %c0_i32_1 = arith.constant 0 : i32
    return %arg0, %c0_i32, %c0_i32_0 : i32, i32, i32
  }
}

module attributes {stable_mosaic.version = 11 : i64} {
  func.func @_pass2_kernel(%arg0: i32, %arg1: memref<16x128xf32, #tpu.memory_space<vmem>>, %arg2: memref<16x128xf32, #tpu.memory_space<vmem>>, %arg3: memref<1x128xf32, #tpu.memory_space<vmem>>, %arg4: memref<1x128xf32, #tpu.memory_space<vmem>>, %arg5: memref<16x128xf32, #tpu.memory_space<vmem>>) attributes {dimension_semantics = [#tpu.dimension_semantics<parallel>], iteration_bounds = array<i64: 2>, scalar_prefetch = 0 : i64, scratch_operands = 0 : i64, tpu.core_type = #tpu.core_type<tc>, window_params = [{transform_indices = @transform_0, window_bounds = array<i64: 16, 128>}, {transform_indices = @transform_1, window_bounds = array<i64: 16, 128>}, {pipeline_mode = #tpu.pipeline_mode<synchronous>, transform_indices = @transform_2, window_bounds = array<i64: 1, 128>}, {pipeline_mode = #tpu.pipeline_mode<synchronous>, transform_indices = @transform_3, window_bounds = array<i64: 1, 128>}, {transform_indices = @transform_4, window_bounds = array<i64: 16, 128>}]} {
    %c0 = arith.constant 0 : index
    %c0_0 = arith.constant 0 : index
    %0 = vector.load %arg2[%c0, %c0_0] : memref<16x128xf32, #tpu.memory_space<vmem>>, vector<16x128xf32>
    %c0_1 = arith.constant 0 : index
    %c0_2 = arith.constant 0 : index
    %1 = vector.load %arg3[%c0_1, %c0_2] : memref<1x128xf32, #tpu.memory_space<vmem>>, vector<1x128xf32>
    %2 = vector.broadcast %1 : vector<1x128xf32> to vector<16x128xf32>
    %3 = arith.mulf %0, %2 : vector<16x128xf32>
    %c0_3 = arith.constant 0 : index
    %c0_4 = arith.constant 0 : index
    %4 = vector.load %arg4[%c0_3, %c0_4] : memref<1x128xf32, #tpu.memory_space<vmem>>, vector<1x128xf32>
    %5 = vector.broadcast %4 : vector<1x128xf32> to vector<16x128xf32>
    %6 = arith.addf %3, %5 : vector<16x128xf32>
    %c0_5 = arith.constant 0 : index
    %c0_6 = arith.constant 0 : index
    %7 = vector.load %arg1[%c0_5, %c0_6] : memref<16x128xf32, #tpu.memory_space<vmem>>, vector<16x128xf32>
    %8 = arith.addf %6, %7 : vector<16x128xf32>
    %cst = arith.constant 0.000000e+00 : f32
    %9 = vector.broadcast %cst : f32 to vector<16x128xf32>
    %10 = arith.maximumf %8, %9 : vector<16x128xf32>
    %c0_7 = arith.constant 0 : index
    %c0_8 = arith.constant 0 : index
    %11 = vector.load %arg5[%c0_7, %c0_8] : memref<16x128xf32, #tpu.memory_space<vmem>>, vector<16x128xf32>
    tpu.vector_store %arg5[%c0_7, %c0_8], %10 {strides = array<i32>} : memref<16x128xf32, #tpu.memory_space<vmem>>, vector<16x128xf32>,
    return
  }
  func.func @transform_0(%arg0: i32) -> (i32, i32) {
    %c0_i32 = arith.constant 0 : i32
    %c0_i32_0 = arith.constant 0 : i32
    return %arg0, %c0_i32 : i32, i32
  }
  func.func @transform_1(%arg0: i32) -> (i32, i32) {
    %c0_i32 = arith.constant 0 : i32
    %c0_i32_0 = arith.constant 0 : i32
    return %arg0, %c0_i32 : i32, i32
  }
  func.func @transform_2(%arg0: i32) -> (i32, i32) {
    %c0_i32 = arith.constant 0 : i32
    %c0_i32_0 = arith.constant 0 : i32
    %c0_i32_1 = arith.constant 0 : i32
    return %c0_i32, %c0_i32_0 : i32, i32
  }
  func.func @transform_3(%arg0: i32) -> (i32, i32) {
    %c0_i32 = arith.constant 0 : i32
    %c0_i32_0 = arith.constant 0 : i32
    %c0_i32_1 = arith.constant 0 : i32
    return %c0_i32, %c0_i32_0 : i32, i32
  }
  func.func @transform_4(%arg0: i32) -> (i32, i32) {
    %c0_i32 = arith.constant 0 : i32
    %c0_i32_0 = arith.constant 0 : i32
    return %arg0, %c0_i32 : i32, i32
  }
}

</mosaic_0001>

<llo_original>
// kernel: tile.24
$region0: #{tile.24}
  #allocation0 [shape = 's32[1]{0}', space=sflag, size = 0x4, scoped, tag = 'scoped memory for tile.24']
  %s0 = inlined_call_operand.vmem [shape: f32[8], index: 0, kind: input, shape index: {}]
  %s1 = inlined_call_operand.vmem [shape: f32[16,8], index: 1, kind: output, shape index: {}]
  // Predicated region
  $region2: #{tile.24} parent=0 // pred_check
    _
  $region3: #{tile.24} parent=0 // pred_check_branch
    %3 = sbr.rel (0) target = $region5
  $region4: #{tile.24} parent=0 // pred_region
    _
  $region5: #{tile.24} parent=0 // pred_fallthru
    _
  %v4 = vld [vmem:[%s0] ss:$0 sm:$0xff]
  %5 = vst [vmem:[%s1] sm:$0xff] %v4
  %s6 = scalar_lea.vmem %s1, 8
  %7 = vst [vmem:[%s6] sm:$0xff] %v4

// kernel: tile.25
$region0: #{tile.25}
  %s0 = inlined_call_operand.vmem [shape: f32[16,8], index: 0, kind: input, shape index: {}]
  %s1 = inlined_call_operand.vmem [shape: f32[1,128], index: 1, kind: output, shape index: {}]
  $region1: #{tile.25} parent=0
    #allocation0 [shape = 'u8[4096]{0}', space=vmem, size = 0x1000, scoped, tag = 'scoped mem for output reshape']
    %v2 = vld [vmem:[%s0] sm:$0x1]
    %vm3 = vcmask 64512
    %4 = vst.msk [vmem:[#allocation0] sm:$0x1] %vm3, %v2
    %s5 = scalar_lea.vmem %s0, 15
    %v6 = vld [vmem:[%s5] sm:$0x1]
    %7 = vrot.lane.b32.xlu0 %v6, 120
    %v8 = vpop.permute.xlu0 %7
    %vm9 = vcmask 1048512
    %10 = vst.msk [vmem:[#allocation0] sm:$0x1] %vm9, %v8
    %s11 = scalar_lea.vmem %s0, 14
    %v12 = vld [vmem:[%s11] sm:$0x1]
    %13 = vrot.lane.b32.xlu0 %v12, 112
    %v14 = vpop.permute.xlu0 %13
    %vm15 = vcmask 982912
    %16 = vst.msk [vmem:[#allocation0] sm:$0x1] %vm15, %v14
    %s17 = scalar_lea.vmem %s0, 13
    %v18 = vld [vmem:[%s17] sm:$0x1]
    %19 = vrot.lane.b32.xlu0 %v18, 104
    %v20 = vpop.permute.xlu0 %19
    %vm21 = vcmask 917312
    %22 = vst.msk [vmem:[#allocation0] sm:$0x1] %vm21, %v20
    %s23 = scalar_lea.vmem %s0, 12
    %v24 = vld [vmem:[%s23] sm:$0x1]
    %25 = vrot.lane.b32.xlu0 %v24, 96
    %v26 = vpop.permute.xlu0 %25
    %vm27 = vcmask 851712
    %28 = vst.msk [vmem:[#allocation0] sm:$0x1] %vm27, %v26
    %s29 = scalar_lea.vmem %s0, 11
    %v30 = vld [vmem:[%s29] sm:$0x1]
    %31 = vrot.lane.b32.xlu0 %v30, 88
    %v32 = vpop.permute.xlu0 %31
    %vm33 = vcmask 786112
    %34 = vst.msk [vmem:[#allocation0] sm:$0x1] %vm33, %v32
    %s35 = scalar_lea.vmem %s0, 10
    %v36 = vld [vmem:[%s35] sm:$0x1]
    %37 = vrot.lane.b32.xlu0 %v36, 80
    %v38 = vpop.permute.xlu0 %37
    %vm39 = vcmask 720512
    %40 = vst.msk [vmem:[#allocation0] sm:$0x1] %vm39, %v38
    %s41 = scalar_lea.vmem %s0, 9
    %v42 = vld [vmem:[%s41] sm:$0x1]
    %43 = vrot.lane.b32.xlu0 %v42, 72
    %v44 = vpop.permute.xlu0 %43
    %vm45 = vcmask 654912
    %46 = vst.msk [vmem:[#allocation0] sm:$0x1] %vm45, %v44
    %s47 = scalar_lea.vmem %s0, 8
    %v48 = vld [vmem:[%s47] sm:$0x1]
    %49 = vrot.lane.b32.xlu0 %v48, 64
    %v50 = vpop.permute.xlu0 %49
    %vm51 = vcmask 589312
    %52 = vst.msk [vmem:[#allocation0] sm:$0x1] %vm51, %v50
    %s53 = scalar_lea.vmem %s0, 7
    %v54 = vld [vmem:[%s53] sm:$0x1]
    %55 = vrot.lane.b32.xlu0 %v54, 56
    %v56 = vpop.permute.xlu0 %55
    %vm57 = vcmask 523712
    %58 = vst.msk [vmem:[#allocation0] sm:$0x1] %vm57, %v56
    %s59 = scalar_lea.vmem %s0, 6
    %v60 = vld [vmem:[%s59] sm:$0x1]
    %61 = vrot.lane.b32.xlu0 %v60, 48
    %v62 = vpop.permute.xlu0 %61
    %vm63 = vcmask 458112
    %64 = vst.msk [vmem:[#allocation0] sm:$0x1] %vm63, %v62
    %s65 = scalar_lea.vmem %s0, 5
    %v66 = vld [vmem:[%s65] sm:$0x1]
    %67 = vrot.lane.b32.xlu0 %v66, 40
    %v68 = vpop.permute.xlu0 %67
    %vm69 = vcmask 392512
    %70 = vst.msk [vmem:[#allocation0] sm:$0x1] %vm69, %v68
    %s71 = scalar_lea.vmem %s0, 4
    %v72 = vld [vmem:[%s71] sm:$0x1]
    %73 = vrot.lane.b32.xlu0 %v72, 32
    %v74 = vpop.permute.xlu0 %73
    %vm75 = vcmask 326912
    %76 = vst.msk [vmem:[#allocation0] sm:$0x1] %vm75, %v74
    %s77 = scalar_lea.vmem %s0, 3
    %v78 = vld [vmem:[%s77] sm:$0x1]
    %79 = vrot.lane.b32.xlu0 %v78, 24
    %v80 = vpop.permute.xlu0 %79
    %vm81 = vcmask 261312
    %82 = vst.msk [vmem:[#allocation0] sm:$0x1] %vm81, %v80
    %s83 = scalar_lea.vmem %s0, 2
    %v84 = vld [vmem:[%s83] sm:$0x1]
    %85 = vrot.lane.b32.xlu0 %v84, 16
    %v86 = vpop.permute.xlu0 %85
    %vm87 = vcmask 195712
    %88 = vst.msk [vmem:[#allocation0] sm:$0x1] %vm87, %v86
    %s89 = scalar_lea.vmem %s0, 1
    %v90 = vld [vmem:[%s89] sm:$0x1]
    %91 = vrot.lane.b32.xlu0 %v90, 8
    %v92 = vpop.permute.xlu0 %91
    %vm93 = vcmask 130112
    %94 = vst.msk [vmem:[#allocation0] sm:$0x1] %vm93, %v92
    %s96 = sshll.u32 1, 1
    %s97 = ssub.s32 %s96, 1
    %v99 = vld [vmem:[#allocation0] sm:%s97]
    %s100 = sshll.u32 1, 1
    %s101 = ssub.s32 %s100, 1
    %102 = vst [vmem:[%s1] sm:%s101] %v99

// kernel: res_layer_forward.3
$region0: #{res_layer_forward.3}
  #allocation0 [shape = 'u32[]', space=smem, size = 0x4, offset = 0x4, fixed_abs, tag = 'smem constant byte address 0x4 - core index']
  #allocation1 [shape = 'u32[144,128]{1,0:T(1,128)}', space=vmem, size = 0x12000, scoped, tag = 'internal scratch']
  %s0 = inlined_call_operand.vmem [shape: f32[32,128], index: 0, kind: input, shape index: {}]
  %s1 = inlined_call_operand.vmem [shape: f32[32,128], index: 1, kind: input, shape index: {}]
  %s2 = inlined_call_operand.vmem [shape: f32[1,128], index: 2, kind: input, shape index: {}]
  %s3 = inlined_call_operand.vmem [shape: f32[1,128], index: 3, kind: input, shape index: {}]
  %s4 = inlined_call_operand.vmem [shape: f32[32,128], index: 4, kind: output, shape index: {}]
  %s5 = sld [smem:[#allocation0]]
  $region49: #{res_layer_forward.3} parent=0
    _
  %s7 = ssub.s32 1, %s5
  %s8 = scalar_select 0, %s7, %s5
  loop: start=0, step=1, limit=4
  $region2: #{res_layer_forward.3} parent=0 // loop_pre_header
    _
  $region3: #{res_layer_forward.3} parent=0 // loop_header
    %s10 = sphi 0, %s14
    %p11 = scmp.ge.s32.totalorder %s10, 4
    %s20 = sphi 0, %s22
    %s23 = sphi 0, %s20
    %s24 = sphi 0, %s23
    %s40 = sphi 0, %s24
    %s46 = sphi 0, %s48
    %s49 = sphi 0, %s46
    %s50 = sphi 0, %s49
    %s66 = sphi 0, %s50
    %s70 = sphi 0, %s70
    %s72 = sphi 0, %s70
    %s73 = sphi 0, %s72
    %s87 = sphi 0, %s73
    %s91 = sphi 0, %s91
    %s93 = sphi 0, %s91
    %s94 = sphi 0, %s93
    %s108 = sphi 0, %s94
    %s114 = sphi 0, %s116
    %s117 = sphi 0, %s114
    %s118 = sphi 0, %s117
    %s134 = sphi 0, %s118
  $region4: #{res_layer_forward.3} parent=0 // loop_header_branch
    %13 = sbr.rel (%p11) target = $region8
  $region5: #{res_layer_forward.3} parent=0 // loop_body
    %s15 = ssub.s32 %s10, 1
    %s16 = ssub.s32 %s10, 2
    %s17 = sadd.s32 %s10, 1
    %s18 = ssub.s32 %s10, %s17
    %p19 = scmp.eq.s32.totalorder %s18, 0
    %s21 = sadd.s32 %s20, 1
    %s22 = scalar_select %p19, %s20, %s21
    %p25 = pneg %p19
    %p26 = scmp.eq.s32.totalorder %s10, 1
    %p27 = por %p25, %p26
    %p28 = scmp.ne.s32.totalorder %s20, %s23
    %p29 = scmp.eq.s32.totalorder %s10, 0
    %p30 = por %p28, %p29
    %p31 = scmp.ne.s32.totalorder %s20, %s23
    %p32 = scmp.eq.s32.totalorder %s15, 1
    %p33 = por %p31, %p32
    %p34 = scmp.ne.s32.totalorder %s23, %s24
    %p35 = scmp.eq.s32.totalorder %s15, 0
    %p36 = por %p34, %p35
    %p37 = scmp.ne.s32.totalorder %s23, %s24
    %p38 = scmp.eq.s32.totalorder %s16, 1
    %p39 = por %p37, %p38
    %p41 = scmp.ne.s32.totalorder %s24, %s40
    %p42 = scmp.eq.s32.totalorder %s16, 0
    %p43 = por %p41, %p42
    %s44 = ssub.s32 %s10, %s17
    %p45 = scmp.eq.s32.totalorder %s44, 0
    %s47 = sadd.s32 %s46, 1
    %s48 = scalar_select %p45, %s46, %s47
    %p51 = pneg %p45
    %p52 = scmp.eq.s32.totalorder %s10, 1
    %p53 = por %p51, %p52
    %p54 = scmp.ne.s32.totalorder %s46, %s49
    %p55 = scmp.eq.s32.totalorder %s10, 0
    %p56 = por %p54, %p55
    %p57 = scmp.ne.s32.totalorder %s46, %s49
    %p58 = scmp.eq.s32.totalorder %s15, 1
    %p59 = por %p57, %p58
    %p60 = scmp.ne.s32.totalorder %s49, %s50
    %p61 = scmp.eq.s32.totalorder %s15, 0
    %p62 = por %p60, %p61
    %p63 = scmp.ne.s32.totalorder %s49, %s50
    %p64 = scmp.eq.s32.totalorder %s16, 1
    %p65 = por %p63, %p64
    %p67 = scmp.ne.s32.totalorder %s50, %s66
    %p68 = scmp.eq.s32.totalorder %s16, 0
    %p69 = por %p67, %p68
    %s71 = sadd.s32 %s70, 1
    %p74 = scmp.eq.s32.totalorder %s10, 1
    %p75 = scmp.ne.s32.totalorder %s70, %s72
    %p76 = scmp.eq.s32.totalorder %s10, 0
    %p77 = por %p75, %p76
    %p78 = scmp.ne.s32.totalorder %s70, %s72
    %p79 = scmp.eq.s32.totalorder %s15, 1
    %p80 = por %p78, %p79
    %p81 = scmp.ne.s32.totalorder %s72, %s73
    %p82 = scmp.eq.s32.totalorder %s15, 0
    %p83 = por %p81, %p82
    %p84 = scmp.ne.s32.totalorder %s72, %s73
    %p85 = scmp.eq.s32.totalorder %s16, 1
    %p86 = por %p84, %p85
    %p88 = scmp.ne.s32.totalorder %s73, %s87
    %p89 = scmp.eq.s32.totalorder %s16, 0
    %p90 = por %p88, %p89
    %s92 = sadd.s32 %s91, 1
    %p95 = scmp.eq.s32.totalorder %s10, 1
    %p96 = scmp.ne.s32.totalorder %s91, %s93
    %p97 = scmp.eq.s32.totalorder %s10, 0
    %p98 = por %p96, %p97
    %p99 = scmp.ne.s32.totalorder %s91, %s93
    %p100 = scmp.eq.s32.totalorder %s15, 1
    %p101 = por %p99, %p100
    %p102 = scmp.ne.s32.totalorder %s93, %s94
    %p103 = scmp.eq.s32.totalorder %s15, 0
    %p104 = por %p102, %p103
    %p105 = scmp.ne.s32.totalorder %s93, %s94
    %p106 = scmp.eq.s32.totalorder %s16, 1
    %p107 = por %p105, %p106
    %p109 = scmp.ne.s32.totalorder %s94, %s108
    %p110 = scmp.eq.s32.totalorder %s16, 0
    %p111 = por %p109, %p110
    %s112 = ssub.s32 %s10, %s17
    %p113 = scmp.eq.s32.totalorder %s112, 0
    %s115 = sadd.s32 %s114, 1
    %s116 = scalar_select %p113, %s114, %s115
    %p119 = pneg %p113
    %p120 = scmp.eq.s32.totalorder %s10, 1
    %p121 = por %p119, %p120
    %p122 = scmp.ne.s32.totalorder %s114, %s117
    %p123 = scmp.eq.s32.totalorder %s10, 0
    %p124 = por %p122, %p123
    %p125 = scmp.ne.s32.totalorder %s114, %s117
    %p126 = scmp.eq.s32.totalorder %s15, 1
    %p127 = por %p125, %p126
    %p128 = scmp.ne.s32.totalorder %s117, %s118
    %p129 = scmp.eq.s32.totalorder %s15, 0
    %p130 = por %p128, %p129
    %p131 = scmp.ne.s32.totalorder %s117, %s118
    %p132 = scmp.eq.s32.totalorder %s16, 1
    %p133 = por %p131, %p132
    %p135 = scmp.ne.s32.totalorder %s118, %s134
    %p136 = scmp.eq.s32.totalorder %s16, 0
    %p137 = por %p135, %p136
    %p138 = scmp.le.s32.totalorder 1, %s10
    %p139 = scmp.lt.s32.totalorder %s10, 3
    %p140 = pnand %p138, %p139
    %p141 = pneg %p140
    // Predicated region
    $region9: #{res_layer_forward.3} parent=5 // pred_check
      _
    $region10: #{res_layer_forward.3} parent=5 // pred_check_branch
      %143 = sbr.rel (%p140) target = $region12
    $region11: #{res_layer_forward.3} parent=5 // pred_region
      %s144 = ssub.s32 %s10, 1
      // Predicated region
      $region13: #{res_layer_forward.3} parent=11 // pred_check
        %p145 = pneg %p83
      $region14: #{res_layer_forward.3} parent=11 // pred_check_branch
        %147 = sbr.rel (%p145) target = $region16
      $region15: #{res_layer_forward.3} parent=11 // pred_region
        _
      $region16: #{res_layer_forward.3} parent=11 // pred_fallthru
        _
      // Predicated region
      $region17: #{res_layer_forward.3} parent=11 // pred_check
        %p148 = pneg %p104
      $region18: #{res_layer_forward.3} parent=11 // pred_check_branch
        %150 = sbr.rel (%p148) target = $region20
      $region19: #{res_layer_forward.3} parent=11 // pred_region
        _
      $region20: #{res_layer_forward.3} parent=11 // pred_fallthru
        _
    $region12: #{res_layer_forward.3} parent=5 // pred_fallthru
      _
    %p151 = scmp.lt.s32.totalorder %s10, 2
    // Predicated region
    $region21: #{res_layer_forward.3} parent=5 // pred_check
      %p152 = pneg %p151
    $region22: #{res_layer_forward.3} parent=5 // pred_check_branch
      %154 = sbr.rel (%p152) target = $region24
    $region23: #{res_layer_forward.3} parent=5 // pred_region
      // Predicated region
      $region25: #{res_layer_forward.3} parent=23 // pred_check
        %p155 = pneg %p30
      $region26: #{res_layer_forward.3} parent=23 // pred_check_branch
        %157 = sbr.rel (%p155) target = $region28
      $region27: #{res_layer_forward.3} parent=23 // pred_region
        %s158 = smul.u32 2, %s10
        %p159 = scmp.lt.s32.totalorder %s158, 3
        %s160 = scalar_select %p159, %s158, 3
        %s161 = smul.addr %s160, 8
        %s162 = scalar_lea.vmem %s0, %s161
        %s163 = smul.u32 2, %s10
      $region28: #{res_layer_forward.3} parent=23 // pred_fallthru
        _
      // Predicated region
      $region29: #{res_layer_forward.3} parent=23 // pred_check
        %p164 = pneg %p56
      $region30: #{res_layer_forward.3} parent=23 // pred_check_branch
        %166 = sbr.rel (%p164) target = $region32
      $region31: #{res_layer_forward.3} parent=23 // pred_region
        %s167 = smul.u32 2, %s10
        %p168 = scmp.lt.s32.totalorder %s167, 3
        %s169 = scalar_select %p168, %s167, 3
        %s170 = smul.addr %s169, 8
        %s171 = scalar_lea.vmem %s1, %s170
        %s172 = smul.u32 2, %s10
      $region32: #{res_layer_forward.3} parent=23 // pred_fallthru
        _
    $region24: #{res_layer_forward.3} parent=5 // pred_fallthru
      _
    %p173 = scmp.le.s32.totalorder 1, %s10
    %p174 = scmp.lt.s32.totalorder %s10, 3
    %p175 = pnand %p173, %p174
    %p176 = pneg %p175
    // Predicated region
    $region33: #{res_layer_forward.3} parent=5 // pred_check
      _
    $region34: #{res_layer_forward.3} parent=5 // pred_check_branch
      %178 = sbr.rel (%p175) target = $region36
    $region35: #{res_layer_forward.3} parent=5 // pred_region
      %s179 = ssub.s32 %s10, 1
      %s180 = smul.u32 2, %s15
      %p181 = scmp.lt.s32.totalorder %s180, 3
      %s182 = scalar_select %p181, %s180, 3
      %s183 = smul.addr %s182, 8
      %s184 = scalar_lea.vmem %s0, %s183
      %p185 = pneg %p36
      %p186 = pneg %p33
      %s187 = smul.u32 2, %s15
      %p188 = scmp.lt.s32.totalorder %s187, 3
      %s189 = scalar_select %p188, %s187, 3
      %s190 = smul.addr %s189, 8
      %s191 = scalar_lea.vmem %s1, %s190
      %p192 = pneg %p62
      %p193 = pneg %p59
      %p194 = pneg %p83
      %p195 = pneg %p80
      %p196 = pneg %p104
      %p197 = pneg %p101
      %p198 = pneg %p130
      %p199 = pneg %p127
      %s200 = smul.u32 2, %s15
      %p201 = scmp.lt.s32.totalorder %s200, 3
      %s202 = scalar_select %p201, %s200, 3
      %s203 = smul.addr %s202, 8
      %s204 = scalar_lea.vmem %s4, %s203
      %s205 = smul.u32 2, %s15
      %p206 = scmp.lt.s32.totalorder %s205, 3
      %s207 = scalar_select %p206, %s205, 3
      %s208 = smul.addr %s207, 8
      %s209 = scalar_lea.vmem %s0, %s208
      %s210 = smul.u32 2, %s15
      %s211 = smul.u32 2, %s15
      %p212 = scmp.lt.s32.totalorder %s211, 3
      %s213 = scalar_select %p212, %s211, 3
      %s214 = smul.addr %s213, 8
      %s215 = scalar_lea.vmem %s1, %s214
      %s216 = smul.u32 2, %s15
      %s217 = smul.u32 2, %s15
      %p218 = scmp.lt.s32.totalorder %s217, 3
      %s219 = scalar_select %p218, %s217, 3
      %s220 = smul.addr %s219, 8
      %s221 = scalar_lea.vmem %s4, %s220
      %s222 = smul.u32 2, %s15
      %v223 = vld [vmem:[%s215] sm:$0xff]
      %v224 = vld [vmem:[%s215 + $0x8] sm:$0xff]
      %v225 = vld [vmem:[%s2] sm:$0x1]
      %v227 = vlaneseq
      %v228 = vshrl.u32 %v227, 7
      %v229 = vsub.s32 0, %v228
      %v230 = vrot.slane %v225, %v229
      %v232 = vmul.f32 %v223, %v230
      %v233 = vmul.f32 %v224, %v230
      %v234 = vld [vmem:[%s3] sm:$0x1]
      %v236 = vlaneseq
      %v237 = vshrl.u32 %v236, 7
      %v238 = vsub.s32 0, %v237
      %v239 = vrot.slane %v234, %v238
      %v241 = vadd.f32 %v232, %v239
      %v242 = vadd.f32 %v233, %v239
      %v243 = vld [vmem:[%s209] sm:$0xff]
      %v244 = vld [vmem:[%s209 + $0x8] sm:$0xff]
      %v245 = vadd.f32 %v241, %v243
      %v246 = vadd.f32 %v242, %v244
      %v247 = vmax.f32 %v245, 0.0
      %v248 = vmax.f32 %v246, 0.0
      %249 = vst [vmem:[%s221] sm:$0xff] %v247
      %250 = vst [vmem:[%s221 + $0x8] sm:$0xff] %v248
      %s251 = smul.u32 2, %s15
      %p252 = scmp.lt.s32.totalorder %s251, 3
      %s253 = scalar_select %p252, %s251, 3
      %s254 = smul.addr %s253, 8
      %s255 = scalar_lea.vmem %s4, %s254
      // Predicated region
      $region37: #{res_layer_forward.3} parent=35 // pred_check
        %p256 = pneg %p127
      $region38: #{res_layer_forward.3} parent=35 // pred_check_branch
        %258 = sbr.rel (%p256) target = $region40
      $region39: #{res_layer_forward.3} parent=35 // pred_region
        %s259 = smul.u32 2, %s15
      $region40: #{res_layer_forward.3} parent=35 // pred_fallthru
        _
    $region36: #{res_layer_forward.3} parent=5 // pred_fallthru
      _
    %p260 = scmp.le.s32.totalorder 2, %s10
    // Predicated region
    $region41: #{res_layer_forward.3} parent=5 // pred_check
      %p261 = pneg %p260
    $region42: #{res_layer_forward.3} parent=5 // pred_check_branch
      %263 = sbr.rel (%p261) target = $region44
    $region43: #{res_layer_forward.3} parent=5 // pred_region
      %s264 = ssub.s32 %s10, 2
      // Predicated region
      $region45: #{res_layer_forward.3} parent=43 // pred_check
        %p265 = pneg %p133
      $region46: #{res_layer_forward.3} parent=43 // pred_check_branch
        %267 = sbr.rel (%p265) target = $region48
      $region47: #{res_layer_forward.3} parent=43 // pred_region
        %s268 = smul.u32 2, %s16
        %p269 = scmp.lt.s32.totalorder %s268, 3
        %s270 = scalar_select %p269, %s268, 3
        %s271 = smul.addr %s270, 8
        %s272 = scalar_lea.vmem %s4, %s271
      $region48: #{res_layer_forward.3} parent=43 // pred_fallthru
        _
    $region44: #{res_layer_forward.3} parent=5 // pred_fallthru
      _
  $region6: #{res_layer_forward.3} parent=0 // loop_footer
    %s14 = sadd.s32 1, %s10
  $region7: #{res_layer_forward.3} parent=0 // loop_footer_branch
    %9 = sbr.rel target = $region3
  $region8: #{res_layer_forward.3} parent=0 // loop_exit
    _

// kernel: res_layer_forward.2
$region0: #{res_layer_forward.2}
  #allocation0 [shape = 'u32[]', space=smem, size = 0x4, offset = 0x4, fixed_abs, tag = 'smem constant byte address 0x4 - core index']
  #allocation1 [shape = 'u32[144,128]{1,0:T(1,128)}', space=vmem, size = 0x12000, scoped, tag = 'internal scratch']
  #allocation2 [shape = 'f32[1,18,128]{2,1,0:T(8,128)}', space=vmem, size = 0x3000, scoped, tag = 'scratch operand']
  %s0 = inlined_call_operand.vmem [shape: bf16[32,64], index: 0, kind: input, shape index: {}]
  %s1 = inlined_call_operand.vmem [shape: bf16[64,128], index: 1, kind: input, shape index: {}]
  %s2 = inlined_call_operand.vmem [shape: f32[1,128], index: 2, kind: input, shape index: {}]
  %s3 = inlined_call_operand.vmem [shape: bf16[3,128,128], index: 3, kind: input, shape index: {}]
  %s4 = inlined_call_operand.vmem [shape: f32[1,128], index: 4, kind: input, shape index: {}]
  %s5 = inlined_call_operand.vmem [shape: bf16[3,128,128], index: 5, kind: input, shape index: {}]
  %s6 = inlined_call_operand.vmem [shape: f32[1,128], index: 6, kind: input, shape index: {}]
  %s7 = inlined_call_operand.vmem [shape: f32[32,128], index: 7, kind: output, shape index: {0}]
  %s8 = inlined_call_operand.vmem [shape: f32[32,128], index: 8, kind: output, shape index: {1}]
  %s9 = inlined_call_operand.vmem [shape: f32[2,8,128], index: 9, kind: output, shape index: {2}]
  %10 = xla_tuple %s7, %s8, %s9
  %s11 = sld [smem:[#allocation0]]
  $region77: #{res_layer_forward.2} parent=0
    _
  %s13 = ssub.s32 1, %s11
  %s14 = scalar_select 0, %s13, %s11
  loop: start=0, step=1, limit=4
  $region2: #{res_layer_forward.2} parent=0 // loop_pre_header
    _
  $region3: #{res_layer_forward.2} parent=0 // loop_header
    %s16 = sphi 0, %s20
    %p17 = scmp.ge.s32.totalorder %s16, 4
    %s26 = sphi 0, %s28
    %s29 = sphi 0, %s26
    %s30 = sphi 0, %s29
    %s46 = sphi 0, %s30
    %s50 = sphi 0, %s50
    %s52 = sphi 0, %s50
    %s53 = sphi 0, %s52
    %s67 = sphi 0, %s53
    %s71 = sphi 0, %s71
    %s73 = sphi 0, %s71
    %s74 = sphi 0, %s73
    %s88 = sphi 0, %s74
    %s92 = sphi 0, %s92
    %s94 = sphi 0, %s92
    %s95 = sphi 0, %s94
    %s109 = sphi 0, %s95
    %s113 = sphi 0, %s113
    %s115 = sphi 0, %s113
    %s116 = sphi 0, %s115
    %s130 = sphi 0, %s116
    %s134 = sphi 0, %s134
    %s136 = sphi 0, %s134
    %s137 = sphi 0, %s136
    %s151 = sphi 0, %s137
    %s155 = sphi 0, %s155
    %s157 = sphi 0, %s155
    %s158 = sphi 0, %s157
    %s172 = sphi 0, %s158
    %s178 = sphi 0, %s180
    %s181 = sphi 0, %s178
    %s182 = sphi 0, %s181
    %s198 = sphi 0, %s182
    %s204 = sphi 0, %s206
    %s207 = sphi 0, %s204
    %s208 = sphi 0, %s207
    %s224 = sphi 0, %s208
    %s230 = sphi 0, %s232
    %s233 = sphi 0, %s230
    %s234 = sphi 0, %s233
    %s250 = sphi 0, %s234
  $region4: #{res_layer_forward.2} parent=0 // loop_header_branch
    %19 = sbr.rel (%p17) target = $region8
  $region5: #{res_layer_forward.2} parent=0 // loop_body
    %s21 = ssub.s32 %s16, 1
    %s22 = ssub.s32 %s16, 2
    %s23 = sadd.s32 %s16, 1
    %s24 = ssub.s32 %s16, %s23
    %p25 = scmp.eq.s32.totalorder %s24, 0
    %s27 = sadd.s32 %s26, 1
    %s28 = scalar_select %p25, %s26, %s27
    %p31 = pneg %p25
    %p32 = scmp.eq.s32.totalorder %s16, 1
    %p33 = por %p31, %p32
    %p34 = scmp.ne.s32.totalorder %s26, %s29
    %p35 = scmp.eq.s32.totalorder %s16, 0
    %p36 = por %p34, %p35
    %p37 = scmp.ne.s32.totalorder %s26, %s29
    %p38 = scmp.eq.s32.totalorder %s21, 1
    %p39 = por %p37, %p38
    %p40 = scmp.ne.s32.totalorder %s29, %s30
    %p41 = scmp.eq.s32.totalorder %s21, 0
    %p42 = por %p40, %p41
    %p43 = scmp.ne.s32.totalorder %s29, %s30
    %p44 = scmp.eq.s32.totalorder %s22, 1
    %p45 = por %p43, %p44
    %p47 = scmp.ne.s32.totalorder %s30, %s46
    %p48 = scmp.eq.s32.totalorder %s22, 0
    %p49 = por %p47, %p48
    %s51 = sadd.s32 %s50, 1
    %p54 = scmp.eq.s32.totalorder %s16, 1
    %p55 = scmp.ne.s32.totalorder %s50, %s52
    %p56 = scmp.eq.s32.totalorder %s16, 0
    %p57 = por %p55, %p56
    %p58 = scmp.ne.s32.totalorder %s50, %s52
    %p59 = scmp.eq.s32.totalorder %s21, 1
    %p60 = por %p58, %p59
    %p61 = scmp.ne.s32.totalorder %s52, %s53
    %p62 = scmp.eq.s32.totalorder %s21, 0
    %p63 = por %p61, %p62
    %p64 = scmp.ne.s32.totalorder %s52, %s53
    %p65 = scmp.eq.s32.totalorder %s22, 1
    %p66 = por %p64, %p65
    %p68 = scmp.ne.s32.totalorder %s53, %s67
    %p69 = scmp.eq.s32.totalorder %s22, 0
    %p70 = por %p68, %p69
    %s72 = sadd.s32 %s71, 1
    %p75 = scmp.eq.s32.totalorder %s16, 1
    %p76 = scmp.ne.s32.totalorder %s71, %s73
    %p77 = scmp.eq.s32.totalorder %s16, 0
    %p78 = por %p76, %p77
    %p79 = scmp.ne.s32.totalorder %s71, %s73
    %p80 = scmp.eq.s32.totalorder %s21, 1
    %p81 = por %p79, %p80
    %p82 = scmp.ne.s32.totalorder %s73, %s74
    %p83 = scmp.eq.s32.totalorder %s21, 0
    %p84 = por %p82, %p83
    %p85 = scmp.ne.s32.totalorder %s73, %s74
    %p86 = scmp.eq.s32.totalorder %s22, 1
    %p87 = por %p85, %p86
    %p89 = scmp.ne.s32.totalorder %s74, %s88
    %p90 = scmp.eq.s32.totalorder %s22, 0
    %p91 = por %p89, %p90
    %s93 = sadd.s32 %s92, 1
    %p96 = scmp.eq.s32.totalorder %s16, 1
    %p97 = scmp.ne.s32.totalorder %s92, %s94
    %p98 = scmp.eq.s32.totalorder %s16, 0
    %p99 = por %p97, %p98
    %p100 = scmp.ne.s32.totalorder %s92, %s94
    %p101 = scmp.eq.s32.totalorder %s21, 1
    %p102 = por %p100, %p101
    %p103 = scmp.ne.s32.totalorder %s94, %s95
    %p104 = scmp.eq.s32.totalorder %s21, 0
    %p105 = por %p103, %p104
    %p106 = scmp.ne.s32.totalorder %s94, %s95
    %p107 = scmp.eq.s32.totalorder %s22, 1
    %p108 = por %p106, %p107
    %p110 = scmp.ne.s32.totalorder %s95, %s109
    %p111 = scmp.eq.s32.totalorder %s22, 0
    %p112 = por %p110, %p111
    %s114 = sadd.s32 %s113, 1
    %p117 = scmp.eq.s32.totalorder %s16, 1
    %p118 = scmp.ne.s32.totalorder %s113, %s115
    %p119 = scmp.eq.s32.totalorder %s16, 0
    %p120 = por %p118, %p119
    %p121 = scmp.ne.s32.totalorder %s113, %s115
    %p122 = scmp.eq.s32.totalorder %s21, 1
    %p123 = por %p121, %p122
    %p124 = scmp.ne.s32.totalorder %s115, %s116
    %p125 = scmp.eq.s32.totalorder %s21, 0
    %p126 = por %p124, %p125
    %p127 = scmp.ne.s32.totalorder %s115, %s116
    %p128 = scmp.eq.s32.totalorder %s22, 1
    %p129 = por %p127, %p128
    %p131 = scmp.ne.s32.totalorder %s116, %s130
    %p132 = scmp.eq.s32.totalorder %s22, 0
    %p133 = por %p131, %p132
    %s135 = sadd.s32 %s134, 1
    %p138 = scmp.eq.s32.totalorder %s16, 1
    %p139 = scmp.ne.s32.totalorder %s134, %s136
    %p140 = scmp.eq.s32.totalorder %s16, 0
    %p141 = por %p139, %p140
    %p142 = scmp.ne.s32.totalorder %s134, %s136
    %p143 = scmp.eq.s32.totalorder %s21, 1
    %p144 = por %p142, %p143
    %p145 = scmp.ne.s32.totalorder %s136, %s137
    %p146 = scmp.eq.s32.totalorder %s21, 0
    %p147 = por %p145, %p146
    %p148 = scmp.ne.s32.totalorder %s136, %s137
    %p149 = scmp.eq.s32.totalorder %s22, 1
    %p150 = por %p148, %p149
    %p152 = scmp.ne.s32.totalorder %s137, %s151
    %p153 = scmp.eq.s32.totalorder %s22, 0
    %p154 = por %p152, %p153
    %s156 = sadd.s32 %s155, 1
    %p159 = scmp.eq.s32.totalorder %s16, 1
    %p160 = scmp.ne.s32.totalorder %s155, %s157
    %p161 = scmp.eq.s32.totalorder %s16, 0
    %p162 = por %p160, %p161
    %p163 = scmp.ne.s32.totalorder %s155, %s157
    %p164 = scmp.eq.s32.totalorder %s21, 1
    %p165 = por %p163, %p164
    %p166 = scmp.ne.s32.totalorder %s157, %s158
    %p167 = scmp.eq.s32.totalorder %s21, 0
    %p168 = por %p166, %p167
    %p169 = scmp.ne.s32.totalorder %s157, %s158
    %p170 = scmp.eq.s32.totalorder %s22, 1
    %p171 = por %p169, %p170
    %p173 = scmp.ne.s32.totalorder %s158, %s172
    %p174 = scmp.eq.s32.totalorder %s22, 0
    %p175 = por %p173, %p174
    %s176 = ssub.s32 %s16, %s23
    %p177 = scmp.eq.s32.totalorder %s176, 0
    %s179 = sadd.s32 %s178, 1
    %s180 = scalar_select %p177, %s178, %s179
    %p183 = pneg %p177
    %p184 = scmp.eq.s32.totalorder %s16, 1
    %p185 = por %p183, %p184
    %p186 = scmp.ne.s32.totalorder %s178, %s181
    %p187 = scmp.eq.s32.totalorder %s16, 0
    %p188 = por %p186, %p187
    %p189 = scmp.ne.s32.totalorder %s178, %s181
    %p190 = scmp.eq.s32.totalorder %s21, 1
    %p191 = por %p189, %p190
    %p192 = scmp.ne.s32.totalorder %s181, %s182
    %p193 = scmp.eq.s32.totalorder %s21, 0
    %p194 = por %p192, %p193
    %p195 = scmp.ne.s32.totalorder %s181, %s182
    %p196 = scmp.eq.s32.totalorder %s22, 1
    %p197 = por %p195, %p196
    %p199 = scmp.ne.s32.totalorder %s182, %s198
    %p200 = scmp.eq.s32.totalorder %s22, 0
    %p201 = por %p199, %p200
    %s202 = ssub.s32 %s16, %s23
    %p203 = scmp.eq.s32.totalorder %s202, 0
    %s205 = sadd.s32 %s204, 1
    %s206 = scalar_select %p203, %s204, %s205
    %p209 = pneg %p203
    %p210 = scmp.eq.s32.totalorder %s16, 1
    %p211 = por %p209, %p210
    %p212 = scmp.ne.s32.totalorder %s204, %s207
    %p213 = scmp.eq.s32.totalorder %s16, 0
    %p214 = por %p212, %p213
    %p215 = scmp.ne.s32.totalorder %s204, %s207
    %p216 = scmp.eq.s32.totalorder %s21, 1
    %p217 = por %p215, %p216
    %p218 = scmp.ne.s32.totalorder %s207, %s208
    %p219 = scmp.eq.s32.totalorder %s21, 0
    %p220 = por %p218, %p219
    %p221 = scmp.ne.s32.totalorder %s207, %s208
    %p222 = scmp.eq.s32.totalorder %s22, 1
    %p223 = por %p221, %p222
    %p225 = scmp.ne.s32.totalorder %s208, %s224
    %p226 = scmp.eq.s32.totalorder %s22, 0
    %p227 = por %p225, %p226
    %s228 = ssub.s32 %s16, %s23
    %p229 = scmp.eq.s32.totalorder %s228, 0
    %s231 = sadd.s32 %s230, 1
    %s232 = scalar_select %p229, %s230, %s231
    %p235 = pneg %p229
    %p236 = scmp.eq.s32.totalorder %s16, 1
    %p237 = por %p235, %p236
    %p238 = scmp.ne.s32.totalorder %s230, %s233
    %p239 = scmp.eq.s32.totalorder %s16, 0
    %p240 = por %p238, %p239
    %p241 = scmp.ne.s32.totalorder %s230, %s233
    %p242 = scmp.eq.s32.totalorder %s21, 1
    %p243 = por %p241, %p242
    %p244 = scmp.ne.s32.totalorder %s233, %s234
    %p245 = scmp.eq.s32.totalorder %s21, 0
    %p246 = por %p244, %p245
    %p247 = scmp.ne.s32.totalorder %s233, %s234
    %p248 = scmp.eq.s32.totalorder %s22, 1
    %p249 = por %p247, %p248
    %p251 = scmp.ne.s32.totalorder %s234, %s250
    %p252 = scmp.eq.s32.totalorder %s22, 0
    %p253 = por %p251, %p252
    %p254 = scmp.le.s32.totalorder 1, %s16
    %p255 = scmp.lt.s32.totalorder %s16, 3
    %p256 = pnand %p254, %p255
    %p257 = pneg %p256
    // Predicated region
    $region9: #{res_layer_forward.2} parent=5 // pred_check
      _
    $region10: #{res_layer_forward.2} parent=5 // pred_check_branch
      %259 = sbr.rel (%p256) target = $region12
    $region11: #{res_layer_forward.2} parent=5 // pred_region
      %s260 = ssub.s32 %s16, 1
      // Predicated region
      $region13: #{res_layer_forward.2} parent=11 // pred_check
        %p261 = pneg %p63
      $region14: #{res_layer_forward.2} parent=11 // pred_check_branch
        %263 = sbr.rel (%p261) target = $region16
      $region15: #{res_layer_forward.2} parent=11 // pred_region
        _
      $region16: #{res_layer_forward.2} parent=11 // pred_fallthru
        _
      // Predicated region
      $region17: #{res_layer_forward.2} parent=11 // pred_check
        %p264 = pneg %p84
      $region18: #{res_layer_forward.2} parent=11 // pred_check_branch
        %266 = sbr.rel (%p264) target = $region20
      $region19: #{res_layer_forward.2} parent=11 // pred_region
        _
      $region20: #{res_layer_forward.2} parent=11 // pred_fallthru
        _
      // Predicated region
      $region21: #{res_layer_forward.2} parent=11 // pred_check
        %p267 = pneg %p105
      $region22: #{res_layer_forward.2} parent=11 // pred_check_branch
        %269 = sbr.rel (%p267) target = $region24
      $region23: #{res_layer_forward.2} parent=11 // pred_region
        _
      $region24: #{res_layer_forward.2} parent=11 // pred_fallthru
        _
      // Predicated region
      $region25: #{res_layer_forward.2} parent=11 // pred_check
        %p270 = pneg %p126
      $region26: #{res_layer_forward.2} parent=11 // pred_check_branch
        %272 = sbr.rel (%p270) target = $region28
      $region27: #{res_layer_forward.2} parent=11 // pred_region
        _
      $region28: #{res_layer_forward.2} parent=11 // pred_fallthru
        _
      // Predicated region
      $region29: #{res_layer_forward.2} parent=11 // pred_check
        %p273 = pneg %p147
      $region30: #{res_layer_forward.2} parent=11 // pred_check_branch
        %275 = sbr.rel (%p273) target = $region32
      $region31: #{res_layer_forward.2} parent=11 // pred_region
        _
      $region32: #{res_layer_forward.2} parent=11 // pred_fallthru
        _
      // Predicated region
      $region33: #{res_layer_forward.2} parent=11 // pred_check
        %p276 = pneg %p168
      $region34: #{res_layer_forward.2} parent=11 // pred_check_branch
        %278 = sbr.rel (%p276) target = $region36
      $region35: #{res_layer_forward.2} parent=11 // pred_region
        _
      $region36: #{res_layer_forward.2} parent=11 // pred_fallthru
        _
    $region12: #{res_layer_forward.2} parent=5 // pred_fallthru
      _
    %p279 = scmp.lt.s32.totalorder %s16, 2
    // Predicated region
    $region37: #{res_layer_forward.2} parent=5 // pred_check
      %p280 = pneg %p279
    $region38: #{res_layer_forward.2} parent=5 // pred_check_branch
      %282 = sbr.rel (%p280) target = $region40
    $region39: #{res_layer_forward.2} parent=5 // pred_region
      // Predicated region
      $region41: #{res_layer_forward.2} parent=39 // pred_check
        %p283 = pneg %p36
      $region42: #{res_layer_forward.2} parent=39 // pred_check_branch
        %285 = sbr.rel (%p283) target = $region44
      $region43: #{res_layer_forward.2} parent=39 // pred_region
        %s286 = smul.u32 2, %s16
        %p287 = scmp.lt.s32.totalorder %s286, 3
        %s288 = scalar_select %p287, %s286, 3
        %s289 = smul.addr %s288, 4
        %s290 = scalar_lea.vmem %s0, %s289
        %s291 = smul.u32 2, %s16
      $region44: #{res_layer_forward.2} parent=39 // pred_fallthru
        _
    $region40: #{res_layer_forward.2} parent=5 // pred_fallthru
      _
    %p292 = scmp.le.s32.totalorder 1, %s16
    %p293 = scmp.lt.s32.totalorder %s16, 3
    %p294 = pnand %p292, %p293
    %p295 = pneg %p294
    // Predicated region
    $region45: #{res_layer_forward.2} parent=5 // pred_check
      _
    $region46: #{res_layer_forward.2} parent=5 // pred_check_branch
      %297 = sbr.rel (%p294) target = $region48
    $region47: #{res_layer_forward.2} parent=5 // pred_region
      %s298 = ssub.s32 %s16, 1
      %s299 = smul.u32 2, %s21
      %p300 = scmp.lt.s32.totalorder %s299, 3
      %s301 = scalar_select %p300, %s299, 3
      %s302 = smul.addr %s301, 4
      %s303 = scalar_lea.vmem %s0, %s302
      %p304 = pneg %p42
      %p305 = pneg %p39
      %p306 = pneg %p63
      %p307 = pneg %p60
      %p308 = pneg %p84
      %p309 = pneg %p81
      %p310 = pneg %p105
      %p311 = pneg %p102
      %p312 = pneg %p126
      %p313 = pneg %p123
      %p314 = pneg %p147
      %p315 = pneg %p144
      %p316 = pneg %p168
      %p317 = pneg %p165
      %p318 = pneg %p194
      %p319 = pneg %p191
      %s320 = smul.u32 2, %s21
      %p321 = scmp.lt.s32.totalorder %s320, 3
      %s322 = scalar_select %p321, %s320, 3
      %s323 = smul.addr %s322, 8
      %s324 = scalar_lea.vmem %s7, %s323
      %p325 = pneg %p220
      %p326 = pneg %p217
      %s327 = smul.u32 2, %s21
      %p328 = scmp.lt.s32.totalorder %s327, 3
      %s329 = scalar_select %p328, %s327, 3
      %s330 = smul.addr %s329, 8
      %s331 = scalar_lea.vmem %s8, %s330
      %p332 = pneg %p246
      %p333 = pneg %p243
      %p334 = scmp.lt.s32.totalorder %s21, 1
      %s335 = scalar_select %p334, %s21, 1
      %s336 = smul.addr %s335, 8
      %s337 = scalar_lea.vmem %s9, %s336
      %s338 = smul.u32 2, %s21
      %p339 = scmp.lt.s32.totalorder %s338, 3
      %s340 = scalar_select %p339, %s338, 3
      %s341 = smul.addr %s340, 4
      %s342 = scalar_lea.vmem %s0, %s341
      %s343 = smul.u32 2, %s21
      %s344 = smul.u32 2, %s21
      %p345 = scmp.lt.s32.totalorder %s344, 3
      %s346 = scalar_select %p345, %s344, 3
      %s347 = smul.addr %s346, 8
      %s348 = scalar_lea.vmem %s7, %s347
      %s349 = smul.u32 2, %s21
      %s350 = smul.u32 2, %s21
      %p351 = scmp.lt.s32.totalorder %s350, 3
      %s352 = scalar_select %p351, %s350, 3
      %s353 = smul.addr %s352, 8
      %s354 = scalar_lea.vmem %s8, %s353
      %s355 = smul.u32 2, %s21
      %p356 = scmp.lt.s32.totalorder %s21, 1
      %s357 = scalar_select %p356, %s21, 1
      %s358 = smul.addr %s357, 8
      %s359 = scalar_lea.vmem %s9, %s358
      %361 = vst [vmem:[#allocation2] sm:$0x1] 0.0
      %362 = vst [vmem:[#allocation2 + $0x11] sm:$0x1] 0.0
      %v363 = vld [vmem:[%s342] sm:$0xf]
      %v364 = vld [vmem:[%s342 + $0x4] sm:$0xf]
      %v365 = vld [vmem:[%s1] sm:$0xf]
      %v366 = vld [vmem:[%s1 + $0x4] sm:$0xf]
      %v367 = vld [vmem:[%s1 + $0x8] sm:$0xf]
      %v368 = vld [vmem:[%s1 + $0xc] sm:$0xf]
      %v369 = vld [vmem:[%s1 + $0x10] sm:$0xf]
      %v370 = vld [vmem:[%s1 + $0x14] sm:$0xf]
      %v371 = vld [vmem:[%s1 + $0x18] sm:$0xf]
      %v372 = vld [vmem:[%s1 + $0x1c] sm:$0xf]
      %v373 = vld [vmem:[%s2] sm:$0x1]
      %v375 = vlaneseq
      %v376 = vshrl.u32 %v375, 7
      %v377 = vsub.s32 0, %v376
      %v378 = vrot.slane %v373, %v377
      %v382 = vunpack.c.l.b16 %v363
      %v383 = vunpack.c.l.b16 %v364
      %v384 = vpack.c.b16 %v383, %v382
      %v393 = vunpack.c.l.b16 %v365
      %v394 = vunpack.c.l.b16 %v366
      %v395 = vunpack.c.l.b16 %v367
      %v396 = vunpack.c.l.b16 %v368
      %v397 = vunpack.c.l.b16 %v369
      %v398 = vunpack.c.l.b16 %v370
      %v399 = vunpack.c.l.b16 %v371
      %v400 = vunpack.c.l.b16 %v372
      %v401 = vpack.c.b16 %v394, %v393
      %v402 = vpack.c.b16 %v396, %v395
      %v403 = vpack.c.b16 %v398, %v397
      %v404 = vpack.c.b16 %v400, %v399
      %vm409 = vcmask 523264
      %v411 = vsel %vm409, %v384, 0
      %413 = vmatprep.subr.bf16.mxu0 0
      %414 = vmatpush1.bf16.msra.mxu0 0
      %415 = vmatprep.subr.bf16.mxu0 0
      %416 = vmatpush1.bf16.msra.mxu0 0
      %417 = vmatprep.subr.bf16.mxu0 0
      %418 = vmatpush1.bf16.msra.mxu0 0
      %419 = vmatprep.subr.bf16.mxu0 0
      %420 = vmatpush1.bf16.msra.mxu0 0
      %421 = vmatprep.subr.bf16.mxu0 0
      %422 = vmatpush1.bf16.msra.mxu0 %v404
      %423 = vmatprep.subr.bf16.mxu0 0
      %424 = vmatpush1.bf16.msra.mxu0 %v403
      %425 = vmatprep.subr.bf16.mxu0 0
      %426 = vmatpush1.bf16.msra.mxu0 %v402
      %427 = vmatprep.subr.bf16.mxu0 0
      %428 = vmatpush1.bf16.msra.mxu0 %v401
      %429 = vmatprep.subr.bf16.mxu0 0
      %430 = vmatpush2.bf16.msra.mxu0 0
      %431 = vmatprep.subr.bf16.mxu0 0
      %432 = vmatpush2.bf16.msra.mxu0 0
      %433 = vmatprep.subr.bf16.mxu0 0
      %434 = vmatpush2.bf16.msra.mxu0 0
      %435 = vmatprep.subr.bf16.mxu0 0
      %436 = vmatpush2.bf16.msra.mxu0 0
      %437 = vmatprep.subr.bf16.mxu0 0
      %438 = vmatpush2.bf16.msra.mxu0 0
      %439 = vmatprep.subr.bf16.mxu0 0
      %440 = vmatpush2.bf16.msra.mxu0 0
      %441 = vmatprep.subr.bf16.mxu0 0
      %442 = vmatpush2.bf16.msra.mxu0 0
      %443 = vmatprep.subr.bf16.mxu0 0
      %444 = vmatpush2.bf16.msra.mxu0 0
      %445 = vmatprep.mubr.bf16.mxu0 0
      %446 = vmatmul.mubr.bf16.gmra.mxu0 %v411
      %v447 = vpop.f32.mrf.mxu0
      %v448 = vadd.f32 %v378, %v447
      %v449 = vpop.f32.mrf.mxu0
      %v450 = vpop.f32.mrf.mxu0
      %v451 = vadd.f32 %v378, %v450
      %v452 = vpop.f32.mrf.mxu0
      %453 = vdwg.mxu0
      %454 = vst [vmem:[%s348] sm:$0xff] %v448
      %455 = vst [vmem:[%s348 + $0x8] sm:$0xff] %v451
      %v456 = vld [vmem:[%s4] sm:$0x1]
      %457 = vst [vmem:[#allocation2 + $0x1] sm:$0xff] %v448
      %458 = vst [vmem:[#allocation2 + $0x9] sm:$0xff] %v451
      %v459 = vld [vmem:[#allocation2] sm:$0xff]
      %v460 = vld [vmem:[#allocation2 + $0x8] sm:$0xff]
      %v461 = vpack.c.bf16 %v460, %v459
      %v462 = vld [vmem:[%s3] sm:$0xf]
      %v463 = vld [vmem:[%s3 + $0x4] sm:$0xf]
      %v464 = vld [vmem:[%s3 + $0x8] sm:$0xf]
      %v465 = vld [vmem:[%s3 + $0xc] sm:$0xf]
      %v466 = vld [vmem:[%s3 + $0x10] sm:$0xf]
      %v467 = vld [vmem:[%s3 + $0x14] sm:$0xf]
      %v468 = vld [vmem:[%s3 + $0x18] sm:$0xf]
      %v469 = vld [vmem:[%s3 + $0x1c] sm:$0xf]
      %v470 = vld [vmem:[%s3 + $0x20] sm:$0xf]
      %v471 = vld [vmem:[%s3 + $0x24] sm:$0xf]
      %v472 = vld [vmem:[%s3 + $0x28] sm:$0xf]
      %v473 = vld [vmem:[%s3 + $0x2c] sm:$0xf]
      %v474 = vld [vmem:[%s3 + $0x30] sm:$0xf]
      %v475 = vld [vmem:[%s3 + $0x34] sm:$0xf]
      %v476 = vld [vmem:[%s3 + $0x38] sm:$0xf]
      %v477 = vld [vmem:[%s3 + $0x3c] sm:$0xf]
      %v478 = vld [vmem:[#allocation2 + $0x1] sm:$0xff]
      %v479 = vld [vmem:[#allocation2 + $0x9] sm:$0xff]
      %v480 = vpack.c.bf16 %v479, %v478
      %s481 = scalar_lea.vmem %s3, 64
      %v482 = vld [vmem:[%s481] sm:$0xf]
      %v483 = vld [vmem:[%s481 + $0x4] sm:$0xf]
      %v484 = vld [vmem:[%s481 + $0x8] sm:$0xf]
      %v485 = vld [vmem:[%s481 + $0xc] sm:$0xf]
      %v486 = vld [vmem:[%s481 + $0x10] sm:$0xf]
      %v487 = vld [vmem:[%s481 + $0x14] sm:$0xf]
      %v488 = vld [vmem:[%s481 + $0x18] sm:$0xf]
      %v489 = vld [vmem:[%s481 + $0x1c] sm:$0xf]
      %v490 = vld [vmem:[%s481 + $0x20] sm:$0xf]
      %v491 = vld [vmem:[%s481 + $0x24] sm:$0xf]
      %v492 = vld [vmem:[%s481 + $0x28] sm:$0xf]
      %v493 = vld [vmem:[%s481 + $0x2c] sm:$0xf]
      %v494 = vld [vmem:[%s481 + $0x30] sm:$0xf]
      %v495 = vld [vmem:[%s481 + $0x34] sm:$0xf]
      %v496 = vld [vmem:[%s481 + $0x38] sm:$0xf]
      %v497 = vld [vmem:[%s481 + $0x3c] sm:$0xf]
      %v514 = vunpack.c.l.b16 %v482
      %v515 = vunpack.c.l.b16 %v483
      %v516 = vunpack.c.l.b16 %v484
      %v517 = vunpack.c.l.b16 %v485
      %v518 = vunpack.c.l.b16 %v486
      %v519 = vunpack.c.l.b16 %v487
      %v520 = vunpack.c.l.b16 %v488
      %v521 = vunpack.c.l.b16 %v489
      %v522 = vunpack.c.l.b16 %v490
      %v523 = vunpack.c.l.b16 %v491
      %v524 = vunpack.c.l.b16 %v492
      %v525 = vunpack.c.l.b16 %v493
      %v526 = vunpack.c.l.b16 %v494
      %v527 = vunpack.c.l.b16 %v495
      %v528 = vunpack.c.l.b16 %v496
      %v529 = vunpack.c.l.b16 %v497
      %v530 = vpack.c.b16 %v515, %v514
      %v531 = vpack.c.b16 %v517, %v516
      %v532 = vpack.c.b16 %v519, %v518
      %v533 = vpack.c.b16 %v521, %v520
      %v534 = vpack.c.b16 %v523, %v522
      %v535 = vpack.c.b16 %v525, %v524
      %v536 = vpack.c.b16 %v527, %v526
      %v537 = vpack.c.b16 %v529, %v528
      %546 = vmatprep.subr.bf16.mxu0 0
      %547 = vmatpush1.bf16.msra.mxu0 %v537
      %548 = vmatprep.subr.bf16.mxu0 0
      %549 = vmatpush1.bf16.msra.mxu0 %v536
      %550 = vmatprep.subr.bf16.mxu0 0
      %551 = vmatpush1.bf16.msra.mxu0 %v535
      %552 = vmatprep.subr.bf16.mxu0 0
      %553 = vmatpush1.bf16.msra.mxu0 %v534
      %554 = vmatprep.subr.bf16.mxu0 0
      %555 = vmatpush1.bf16.msra.mxu0 %v533
      %556 = vmatprep.subr.bf16.mxu0 0
      %557 = vmatpush1.bf16.msra.mxu0 %v532
      %558 = vmatprep.subr.bf16.mxu0 0
      %559 = vmatpush1.bf16.msra.mxu0 %v531
      %560 = vmatprep.subr.bf16.mxu0 0
      %561 = vmatpush1.bf16.msra.mxu0 %v530
      %562 = vmatprep.subr.bf16.mxu0 0
      %563 = vmatpush2.bf16.msra.mxu0 0
      %564 = vmatprep.subr.bf16.mxu0 0
      %565 = vmatpush2.bf16.msra.mxu0 0
      %566 = vmatprep.subr.bf16.mxu0 0
      %567 = vmatpush2.bf16.msra.mxu0 0
      %568 = vmatprep.subr.bf16.mxu0 0
      %569 = vmatpush2.bf16.msra.mxu0 0
      %570 = vmatprep.subr.bf16.mxu0 0
      %571 = vmatpush2.bf16.msra.mxu0 0
      %572 = vmatprep.subr.bf16.mxu0 0
      %573 = vmatpush2.bf16.msra.mxu0 0
      %574 = vmatprep.subr.bf16.mxu0 0
      %575 = vmatpush2.bf16.msra.mxu0 0
      %576 = vmatprep.subr.bf16.mxu0 0
      %577 = vmatpush2.bf16.msra.mxu0 0
      %578 = vmatprep.mubr.bf16.mxu0 0
      %579 = vmatmul.mubr.bf16.gmra.mxu0 %v480
      %v580 = vpop.f32.mrf.mxu0
      %v581 = vadd.f32 0.0, %v580
      %v582 = vpop.f32.mrf.mxu0
      %v583 = vpop.f32.mrf.mxu0
      %v584 = vadd.f32 0.0, %v583
      %v585 = vpop.f32.mrf.mxu0
      %586 = vdwg.mxu0
      %v603 = vunpack.c.l.b16 %v462
      %v604 = vunpack.c.l.b16 %v463
      %v605 = vunpack.c.l.b16 %v464
      %v606 = vunpack.c.l.b16 %v465
      %v607 = vunpack.c.l.b16 %v466
      %v608 = vunpack.c.l.b16 %v467
      %v609 = vunpack.c.l.b16 %v468
      %v610 = vunpack.c.l.b16 %v469
      %v611 = vunpack.c.l.b16 %v470
      %v612 = vunpack.c.l.b16 %v471
      %v613 = vunpack.c.l.b16 %v472
      %v614 = vunpack.c.l.b16 %v473
      %v615 = vunpack.c.l.b16 %v474
      %v616 = vunpack.c.l.b16 %v475
      %v617 = vunpack.c.l.b16 %v476
      %v618 = vunpack.c.l.b16 %v477
      %v619 = vpack.c.b16 %v604, %v603
      %v620 = vpack.c.b16 %v606, %v605
      %v621 = vpack.c.b16 %v608, %v607
      %v622 = vpack.c.b16 %v610, %v609
      %v623 = vpack.c.b16 %v612, %v611
      %v624 = vpack.c.b16 %v614, %v613
      %v625 = vpack.c.b16 %v616, %v615
      %v626 = vpack.c.b16 %v618, %v617
      %635 = vmatprep.subr.bf16.mxu0 0
      %636 = vmatpush1.bf16.msra.mxu0 %v626
      %637 = vmatprep.subr.bf16.mxu0 0
      %638 = vmatpush1.bf16.msra.mxu0 %v625
      %639 = vmatprep.subr.bf16.mxu0 0
      %640 = vmatpush1.bf16.msra.mxu0 %v624
      %641 = vmatprep.subr.bf16.mxu0 0
      %642 = vmatpush1.bf16.msra.mxu0 %v623
      %643 = vmatprep.subr.bf16.mxu0 0
      %644 = vmatpush1.bf16.msra.mxu0 %v622
      %645 = vmatprep.subr.bf16.mxu0 0
      %646 = vmatpush1.bf16.msra.mxu0 %v621
      %647 = vmatprep.subr.bf16.mxu0 0
      %648 = vmatpush1.bf16.msra.mxu0 %v620
      %649 = vmatprep.subr.bf16.mxu0 0
      %650 = vmatpush1.bf16.msra.mxu0 %v619
      %651 = vmatprep.subr.bf16.mxu0 0
      %652 = vmatpush2.bf16.msra.mxu0 0
      %653 = vmatprep.subr.bf16.mxu0 0
      %654 = vmatpush2.bf16.msra.mxu0 0
      %655 = vmatprep.subr.bf16.mxu0 0
      %656 = vmatpush2.bf16.msra.mxu0 0
      %657 = vmatprep.subr.bf16.mxu0 0
      %658 = vmatpush2.bf16.msra.mxu0 0
      %659 = vmatprep.subr.bf16.mxu0 0
      %660 = vmatpush2.bf16.msra.mxu0 0
      %661 = vmatprep.subr.bf16.mxu0 0
      %662 = vmatpush2.bf16.msra.mxu0 0
      %663 = vmatprep.subr.bf16.mxu0 0
      %664 = vmatpush2.bf16.msra.mxu0 0
      %665 = vmatprep.subr.bf16.mxu0 0
      %666 = vmatpush2.bf16.msra.mxu0 0
      %667 = vmatprep.mubr.bf16.mxu0 0
      %668 = vmatmul.mubr.bf16.gmra.mxu0 %v461
      %v669 = vpop.f32.mrf.mxu0
      %v670 = vadd.f32 %v581, %v669
      %v671 = vpop.f32.mrf.mxu0
      %v672 = vpop.f32.mrf.mxu0
      %v673 = vadd.f32 %v584, %v672
      %v674 = vpop.f32.mrf.mxu0
      %675 = vdwg.mxu0
      %v676 = vld [vmem:[#allocation2 + $0x2] sm:$0xff]
      %v677 = vld [vmem:[#allocation2 + $0xa] sm:$0xff]
      %v678 = vpack.c.bf16 %v677, %v676
      %s679 = scalar_lea.vmem %s3, 128
      %v680 = vld [vmem:[%s679] sm:$0xf]
      %v681 = vld [vmem:[%s679 + $0x4] sm:$0xf]
      %v682 = vld [vmem:[%s679 + $0x8] sm:$0xf]
      %v683 = vld [vmem:[%s679 + $0xc] sm:$0xf]
      %v684 = vld [vmem:[%s679 + $0x10] sm:$0xf]
      %v685 = vld [vmem:[%s679 + $0x14] sm:$0xf]
      %v686 = vld [vmem:[%s679 + $0x18] sm:$0xf]
      %v687 = vld [vmem:[%s679 + $0x1c] sm:$0xf]
      %v688 = vld [vmem:[%s679 + $0x20] sm:$0xf]
      %v689 = vld [vmem:[%s679 + $0x24] sm:$0xf]
      %v690 = vld [vmem:[%s679 + $0x28] sm:$0xf]
      %v691 = vld [vmem:[%s679 + $0x2c] sm:$0xf]
      %v692 = vld [vmem:[%s679 + $0x30] sm:$0xf]
      %v693 = vld [vmem:[%s679 + $0x34] sm:$0xf]
      %v694 = vld [vmem:[%s679 + $0x38] sm:$0xf]
      %v695 = vld [vmem:[%s679 + $0x3c] sm:$0xf]
      %v712 = vunpack.c.l.b16 %v680
      %v713 = vunpack.c.l.b16 %v681
      %v714 = vunpack.c.l.b16 %v682
      %v715 = vunpack.c.l.b16 %v683
      %v716 = vunpack.c.l.b16 %v684
      %v717 = vunpack.c.l.b16 %v685
      %v718 = vunpack.c.l.b16 %v686
      %v719 = vunpack.c.l.b16 %v687
      %v720 = vunpack.c.l.b16 %v688
      %v721 = vunpack.c.l.b16 %v689
      %v722 = vunpack.c.l.b16 %v690
      %v723 = vunpack.c.l.b16 %v691
      %v724 = vunpack.c.l.b16 %v692
      %v725 = vunpack.c.l.b16 %v693
      %v726 = vunpack.c.l.b16 %v694
      %v727 = vunpack.c.l.b16 %v695
      %v728 = vpack.c.b16 %v713, %v712
      %v729 = vpack.c.b16 %v715, %v714
      %v730 = vpack.c.b16 %v717, %v716
      %v731 = vpack.c.b16 %v719, %v718
      %v732 = vpack.c.b16 %v721, %v720
      %v733 = vpack.c.b16 %v723, %v722
      %v734 = vpack.c.b16 %v725, %v724
      %v735 = vpack.c.b16 %v727, %v726
      %744 = vmatprep.subr.bf16.mxu0 0
      %745 = vmatpush1.bf16.msra.mxu0 %v735
      %746 = vmatprep.subr.bf16.mxu0 0
      %747 = vmatpush1.bf16.msra.mxu0 %v734
      %748 = vmatprep.subr.bf16.mxu0 0
      %749 = vmatpush1.bf16.msra.mxu0 %v733
      %750 = vmatprep.subr.bf16.mxu0 0
      %751 = vmatpush1.bf16.msra.mxu0 %v732
      %752 = vmatprep.subr.bf16.mxu0 0
      %753 = vmatpush1.bf16.msra.mxu0 %v731
      %754 = vmatprep.subr.bf16.mxu0 0
      %755 = vmatpush1.bf16.msra.mxu0 %v730
      %756 = vmatprep.subr.bf16.mxu0 0
      %757 = vmatpush1.bf16.msra.mxu0 %v729
      %758 = vmatprep.subr.bf16.mxu0 0
      %759 = vmatpush1.bf16.msra.mxu0 %v728
      %760 = vmatprep.subr.bf16.mxu0 0
      %761 = vmatpush2.bf16.msra.mxu0 0
      %762 = vmatprep.subr.bf16.mxu0 0
      %763 = vmatpush2.bf16.msra.mxu0 0
      %764 = vmatprep.subr.bf16.mxu0 0
      %765 = vmatpush2.bf16.msra.mxu0 0
      %766 = vmatprep.subr.bf16.mxu0 0
      %767 = vmatpush2.bf16.msra.mxu0 0
      %768 = vmatprep.subr.bf16.mxu0 0
      %769 = vmatpush2.bf16.msra.mxu0 0
      %770 = vmatprep.subr.bf16.mxu0 0
      %771 = vmatpush2.bf16.msra.mxu0 0
      %772 = vmatprep.subr.bf16.mxu0 0
      %773 = vmatpush2.bf16.msra.mxu0 0
      %774 = vmatprep.subr.bf16.mxu0 0
      %775 = vmatpush2.bf16.msra.mxu0 0
      %776 = vmatprep.mubr.bf16.mxu0 0
      %777 = vmatmul.mubr.bf16.gmra.mxu0 %v678
      %v778 = vpop.f32.mrf.mxu0
      %v779 = vadd.f32 0.0, %v778
      %v780 = vpop.f32.mrf.mxu0
      %v781 = vpop.f32.mrf.mxu0
      %v782 = vadd.f32 0.0, %v781
      %v783 = vpop.f32.mrf.mxu0
      %784 = vdwg.mxu0
      %v785 = vadd.f32 %v670, %v779
      %v786 = vadd.f32 %v673, %v782
      %v788 = vlaneseq
      %v789 = vshrl.u32 %v788, 7
      %v790 = vsub.s32 0, %v789
      %v791 = vrot.slane %v456, %v790
      %v793 = vadd.f32 %v785, %v791
      %v794 = vadd.f32 %v786, %v791
      %v795 = vmax.f32 %v793, 0.0
      %v796 = vmax.f32 %v794, 0.0
      %v797 = vld [vmem:[%s6] sm:$0x1]
      %798 = vst [vmem:[#allocation2 + $0x1] sm:$0xff] %v795
      %799 = vst [vmem:[#allocation2 + $0x9] sm:$0xff] %v796
      %v800 = vld [vmem:[#allocation2] sm:$0xff]
      %v801 = vld [vmem:[#allocation2 + $0x8] sm:$0xff]
      %v802 = vpack.c.bf16 %v801, %v800
      %v803 = vld [vmem:[%s5] sm:$0xf]
      %v804 = vld [vmem:[%s5 + $0x4] sm:$0xf]
      %v805 = vld [vmem:[%s5 + $0x8] sm:$0xf]
      %v806 = vld [vmem:[%s5 + $0xc] sm:$0xf]
      %v807 = vld [vmem:[%s5 + $0x10] sm:$0xf]
      %v808 = vld [vmem:[%s5 + $0x14] sm:$0xf]
      %v809 = vld [vmem:[%s5 + $0x18] sm:$0xf]
      %v810 = vld [vmem:[%s5 + $0x1c] sm:$0xf]
      %v811 = vld [vmem:[%s5 + $0x20] sm:$0xf]
      %v812 = vld [vmem:[%s5 + $0x24] sm:$0xf]
      %v813 = vld [vmem:[%s5 + $0x28] sm:$0xf]
      %v814 = vld [vmem:[%s5 + $0x2c] sm:$0xf]
      %v815 = vld [vmem:[%s5 + $0x30] sm:$0xf]
      %v816 = vld [vmem:[%s5 + $0x34] sm:$0xf]
      %v817 = vld [vmem:[%s5 + $0x38] sm:$0xf]
      %v818 = vld [vmem:[%s5 + $0x3c] sm:$0xf]
      %v819 = vld [vmem:[#allocation2 + $0x1] sm:$0xff]
      %v820 = vld [vmem:[#allocation2 + $0x9] sm:$0xff]
      %v821 = vpack.c.bf16 %v820, %v819
      %s822 = scalar_lea.vmem %s5, 64
      %v823 = vld [vmem:[%s822] sm:$0xf]
      %v824 = vld [vmem:[%s822 + $0x4] sm:$0xf]
      %v825 = vld [vmem:[%s822 + $0x8] sm:$0xf]
      %v826 = vld [vmem:[%s822 + $0xc] sm:$0xf]
      %v827 = vld [vmem:[%s822 + $0x10] sm:$0xf]
      %v828 = vld [vmem:[%s822 + $0x14] sm:$0xf]
      %v829 = vld [vmem:[%s822 + $0x18] sm:$0xf]
      %v830 = vld [vmem:[%s822 + $0x1c] sm:$0xf]
      %v831 = vld [vmem:[%s822 + $0x20] sm:$0xf]
      %v832 = vld [vmem:[%s822 + $0x24] sm:$0xf]
      %v833 = vld [vmem:[%s822 + $0x28] sm:$0xf]
      %v834 = vld [vmem:[%s822 + $0x2c] sm:$0xf]
      %v835 = vld [vmem:[%s822 + $0x30] sm:$0xf]
      %v836 = vld [vmem:[%s822 + $0x34] sm:$0xf]
      %v837 = vld [vmem:[%s822 + $0x38] sm:$0xf]
      %v838 = vld [vmem:[%s822 + $0x3c] sm:$0xf]
      %v855 = vunpack.c.l.b16 %v823
      %v856 = vunpack.c.l.b16 %v824
      %v857 = vunpack.c.l.b16 %v825
      %v858 = vunpack.c.l.b16 %v826
      %v859 = vunpack.c.l.b16 %v827
      %v860 = vunpack.c.l.b16 %v828
      %v861 = vunpack.c.l.b16 %v829
      %v862 = vunpack.c.l.b16 %v830
      %v863 = vunpack.c.l.b16 %v831
      %v864 = vunpack.c.l.b16 %v832
      %v865 = vunpack.c.l.b16 %v833
      %v866 = vunpack.c.l.b16 %v834
      %v867 = vunpack.c.l.b16 %v835
      %v868 = vunpack.c.l.b16 %v836
      %v869 = vunpack.c.l.b16 %v837
      %v870 = vunpack.c.l.b16 %v838
      %v871 = vpack.c.b16 %v856, %v855
      %v872 = vpack.c.b16 %v858, %v857
      %v873 = vpack.c.b16 %v860, %v859
      %v874 = vpack.c.b16 %v862, %v861
      %v875 = vpack.c.b16 %v864, %v863
      %v876 = vpack.c.b16 %v866, %v865
      %v877 = vpack.c.b16 %v868, %v867
      %v878 = vpack.c.b16 %v870, %v869
      %887 = vmatprep.subr.bf16.mxu0 0
      %888 = vmatpush1.bf16.msra.mxu0 %v878
      %889 = vmatprep.subr.bf16.mxu0 0
      %890 = vmatpush1.bf16.msra.mxu0 %v877
      %891 = vmatprep.subr.bf16.mxu0 0
      %892 = vmatpush1.bf16.msra.mxu0 %v876
      %893 = vmatprep.subr.bf16.mxu0 0
      %894 = vmatpush1.bf16.msra.mxu0 %v875
      %895 = vmatprep.subr.bf16.mxu0 0
      %896 = vmatpush1.bf16.msra.mxu0 %v874
      %897 = vmatprep.subr.bf16.mxu0 0
      %898 = vmatpush1.bf16.msra.mxu0 %v873
      %899 = vmatprep.subr.bf16.mxu0 0
      %900 = vmatpush1.bf16.msra.mxu0 %v872
      %901 = vmatprep.subr.bf16.mxu0 0
      %902 = vmatpush1.bf16.msra.mxu0 %v871
      %903 = vmatprep.subr.bf16.mxu0 0
      %904 = vmatpush2.bf16.msra.mxu0 0
      %905 = vmatprep.subr.bf16.mxu0 0
      %906 = vmatpush2.bf16.msra.mxu0 0
      %907 = vmatprep.subr.bf16.mxu0 0
      %908 = vmatpush2.bf16.msra.mxu0 0
      %909 = vmatprep.subr.bf16.mxu0 0
      %910 = vmatpush2.bf16.msra.mxu0 0
      %911 = vmatprep.subr.bf16.mxu0 0
      %912 = vmatpush2.bf16.msra.mxu0 0
      %913 = vmatprep.subr.bf16.mxu0 0
      %914 = vmatpush2.bf16.msra.mxu0 0
      %915 = vmatprep.subr.bf16.mxu0 0
      %916 = vmatpush2.bf16.msra.mxu0 0
      %917 = vmatprep.subr.bf16.mxu0 0
      %918 = vmatpush2.bf16.msra.mxu0 0
      %919 = vmatprep.mubr.bf16.mxu0 0
      %920 = vmatmul.mubr.bf16.gmra.mxu0 %v821
      %v921 = vpop.f32.mrf.mxu0
      %v922 = vadd.f32 0.0, %v921
      %v923 = vpop.f32.mrf.mxu0
      %v924 = vpop.f32.mrf.mxu0
      %v925 = vadd.f32 0.0, %v924
      %v926 = vpop.f32.mrf.mxu0
      %927 = vdwg.mxu0
      %v944 = vunpack.c.l.b16 %v803
      %v945 = vunpack.c.l.b16 %v804
      %v946 = vunpack.c.l.b16 %v805
      %v947 = vunpack.c.l.b16 %v806
      %v948 = vunpack.c.l.b16 %v807
      %v949 = vunpack.c.l.b16 %v808
      %v950 = vunpack.c.l.b16 %v809
      %v951 = vunpack.c.l.b16 %v810
      %v952 = vunpack.c.l.b16 %v811
      %v953 = vunpack.c.l.b16 %v812
      %v954 = vunpack.c.l.b16 %v813
      %v955 = vunpack.c.l.b16 %v814
      %v956 = vunpack.c.l.b16 %v815
      %v957 = vunpack.c.l.b16 %v816
      %v958 = vunpack.c.l.b16 %v817
      %v959 = vunpack.c.l.b16 %v818
      %v960 = vpack.c.b16 %v945, %v944
      %v961 = vpack.c.b16 %v947, %v946
      %v962 = vpack.c.b16 %v949, %v948
      %v963 = vpack.c.b16 %v951, %v950
      %v964 = vpack.c.b16 %v953, %v952
      %v965 = vpack.c.b16 %v955, %v954
      %v966 = vpack.c.b16 %v957, %v956
      %v967 = vpack.c.b16 %v959, %v958
      %976 = vmatprep.subr.bf16.mxu0 0
      %977 = vmatpush1.bf16.msra.mxu0 %v967
      %978 = vmatprep.subr.bf16.mxu0 0
      %979 = vmatpush1.bf16.msra.mxu0 %v966
      %980 = vmatprep.subr.bf16.mxu0 0
      %981 = vmatpush1.bf16.msra.mxu0 %v965
      %982 = vmatprep.subr.bf16.mxu0 0
      %983 = vmatpush1.bf16.msra.mxu0 %v964
      %984 = vmatprep.subr.bf16.mxu0 0
      %985 = vmatpush1.bf16.msra.mxu0 %v963
      %986 = vmatprep.subr.bf16.mxu0 0
      %987 = vmatpush1.bf16.msra.mxu0 %v962
      %988 = vmatprep.subr.bf16.mxu0 0
      %989 = vmatpush1.bf16.msra.mxu0 %v961
      %990 = vmatprep.subr.bf16.mxu0 0
      %991 = vmatpush1.bf16.msra.mxu0 %v960
      %992 = vmatprep.subr.bf16.mxu0 0
      %993 = vmatpush2.bf16.msra.mxu0 0
      %994 = vmatprep.subr.bf16.mxu0 0
      %995 = vmatpush2.bf16.msra.mxu0 0
      %996 = vmatprep.subr.bf16.mxu0 0
      %997 = vmatpush2.bf16.msra.mxu0 0
      %998 = vmatprep.subr.bf16.mxu0 0
      %999 = vmatpush2.bf16.msra.mxu0 0
      %1000 = vmatprep.subr.bf16.mxu0 0
      %1001 = vmatpush2.bf16.msra.mxu0 0
      %1002 = vmatprep.subr.bf16.mxu0 0
      %1003 = vmatpush2.bf16.msra.mxu0 0
      %1004 = vmatprep.subr.bf16.mxu0 0
      %1005 = vmatpush2.bf16.msra.mxu0 0
      %1006 = vmatprep.subr.bf16.mxu0 0
      %1007 = vmatpush2.bf16.msra.mxu0 0
      %1008 = vmatprep.mubr.bf16.mxu0 0
      %1009 = vmatmul.mubr.bf16.gmra.mxu0 %v802
      %v1010 = vpop.f32.mrf.mxu0
      %v1011 = vadd.f32 %v922, %v1010
      %v1012 = vpop.f32.mrf.mxu0
      %v1013 = vpop.f32.mrf.mxu0
      %v1014 = vadd.f32 %v925, %v1013
      %v1015 = vpop.f32.mrf.mxu0
      %1016 = vdwg.mxu0
      %v1017 = vld [vmem:[#allocation2 + $0x2] sm:$0xff]
      %v1018 = vld [vmem:[#allocation2 + $0xa] sm:$0xff]
      %v1019 = vpack.c.bf16 %v1018, %v1017
      %s1020 = scalar_lea.vmem %s5, 128
      %v1021 = vld [vmem:[%s1020] sm:$0xf]
      %v1022 = vld [vmem:[%s1020 + $0x4] sm:$0xf]
      %v1023 = vld [vmem:[%s1020 + $0x8] sm:$0xf]
      %v1024 = vld [vmem:[%s1020 + $0xc] sm:$0xf]
      %v1025 = vld [vmem:[%s1020 + $0x10] sm:$0xf]
      %v1026 = vld [vmem:[%s1020 + $0x14] sm:$0xf]
      %v1027 = vld [vmem:[%s1020 + $0x18] sm:$0xf]
      %v1028 = vld [vmem:[%s1020 + $0x1c] sm:$0xf]
      %v1029 = vld [vmem:[%s1020 + $0x20] sm:$0xf]
      %v1030 = vld [vmem:[%s1020 + $0x24] sm:$0xf]
      %v1031 = vld [vmem:[%s1020 + $0x28] sm:$0xf]
      %v1032 = vld [vmem:[%s1020 + $0x2c] sm:$0xf]
      %v1033 = vld [vmem:[%s1020 + $0x30] sm:$0xf]
      %v1034 = vld [vmem:[%s1020 + $0x34] sm:$0xf]
      %v1035 = vld [vmem:[%s1020 + $0x38] sm:$0xf]
      %v1036 = vld [vmem:[%s1020 + $0x3c] sm:$0xf]
      %v1053 = vunpack.c.l.b16 %v1021
      %v1054 = vunpack.c.l.b16 %v1022
      %v1055 = vunpack.c.l.b16 %v1023
      %v1056 = vunpack.c.l.b16 %v1024
      %v1057 = vunpack.c.l.b16 %v1025
      %v1058 = vunpack.c.l.b16 %v1026
      %v1059 = vunpack.c.l.b16 %v1027
      %v1060 = vunpack.c.l.b16 %v1028
      %v1061 = vunpack.c.l.b16 %v1029
      %v1062 = vunpack.c.l.b16 %v1030
      %v1063 = vunpack.c.l.b16 %v1031
      %v1064 = vunpack.c.l.b16 %v1032
      %v1065 = vunpack.c.l.b16 %v1033
      %v1066 = vunpack.c.l.b16 %v1034
      %v1067 = vunpack.c.l.b16 %v1035
      %v1068 = vunpack.c.l.b16 %v1036
      %v1069 = vpack.c.b16 %v1054, %v1053
      %v1070 = vpack.c.b16 %v1056, %v1055
      %v1071 = vpack.c.b16 %v1058, %v1057
      %v1072 = vpack.c.b16 %v1060, %v1059
      %v1073 = vpack.c.b16 %v1062, %v1061
      %v1074 = vpack.c.b16 %v1064, %v1063
      %v1075 = vpack.c.b16 %v1066, %v1065
      %v1076 = vpack.c.b16 %v1068, %v1067
      %1085 = vmatprep.subr.bf16.mxu0 0
      %1086 = vmatpush1.bf16.msra.mxu0 %v1076
      %1087 = vmatprep.subr.bf16.mxu0 0
      %1088 = vmatpush1.bf16.msra.mxu0 %v1075
      %1089 = vmatprep.subr.bf16.mxu0 0
      %1090 = vmatpush1.bf16.msra.mxu0 %v1074
      %1091 = vmatprep.subr.bf16.mxu0 0
      %1092 = vmatpush1.bf16.msra.mxu0 %v1073
      %1093 = vmatprep.subr.bf16.mxu0 0
      %1094 = vmatpush1.bf16.msra.mxu0 %v1072
      %1095 = vmatprep.subr.bf16.mxu0 0
      %1096 = vmatpush1.bf16.msra.mxu0 %v1071
      %1097 = vmatprep.subr.bf16.mxu0 0
      %1098 = vmatpush1.bf16.msra.mxu0 %v1070
      %1099 = vmatprep.subr.bf16.mxu0 0
      %1100 = vmatpush1.bf16.msra.mxu0 %v1069
      %1101 = vmatprep.subr.bf16.mxu0 0
      %1102 = vmatpush2.bf16.msra.mxu0 0
      %1103 = vmatprep.subr.bf16.mxu0 0
      %1104 = vmatpush2.bf16.msra.mxu0 0
      %1105 = vmatprep.subr.bf16.mxu0 0
      %1106 = vmatpush2.bf16.msra.mxu0 0
      %1107 = vmatprep.subr.bf16.mxu0 0
      %1108 = vmatpush2.bf16.msra.mxu0 0
      %1109 = vmatprep.subr.bf16.mxu0 0
      %1110 = vmatpush2.bf16.msra.mxu0 0
      %1111 = vmatprep.subr.bf16.mxu0 0
      %1112 = vmatpush2.bf16.msra.mxu0 0
      %1113 = vmatprep.subr.bf16.mxu0 0
      %1114 = vmatpush2.bf16.msra.mxu0 0
      %1115 = vmatprep.subr.bf16.mxu0 0
      %1116 = vmatpush2.bf16.msra.mxu0 0
      %1117 = vmatprep.mubr.bf16.mxu0 0
      %1118 = vmatmul.mubr.bf16.gmra.mxu0 %v1019
      %v1119 = vpop.f32.mrf.mxu0
      %v1120 = vadd.f32 0.0, %v1119
      %v1121 = vpop.f32.mrf.mxu0
      %v1122 = vpop.f32.mrf.mxu0
      %v1123 = vadd.f32 0.0, %v1122
      %v1124 = vpop.f32.mrf.mxu0
      %1125 = vdwg.mxu0
      %v1126 = vadd.f32 %v1011, %v1120
      %v1127 = vadd.f32 %v1014, %v1123
      %v1129 = vlaneseq
      %v1130 = vshrl.u32 %v1129, 7
      %v1131 = vsub.s32 0, %v1130
      %v1132 = vrot.slane %v797, %v1131
      %v1134 = vadd.f32 %v1126, %v1132
      %v1135 = vadd.f32 %v1127, %v1132
      %1136 = vst [vmem:[%s354] sm:$0xff] %v1134
      %1137 = vst [vmem:[%s354 + $0x8] sm:$0xff] %v1135
      %v1138 = vadd.f32 %v1134, %v1135
      %v1139 = vrot.slane %v1138, 4
      %v1140 = vadd.f32 %v1138, %v1139
      %v1141 = vrot.slane %v1140, 2
      %v1142 = vadd.f32 %v1140, %v1141
      %v1143 = vrot.slane %v1142, 1
      %v1144 = vadd.f32 %v1142, %v1143
      %v1145 = vmul.f32 %v1134, %v1134
      %v1146 = vmul.f32 %v1135, %v1135
      %v1147 = vadd.f32 %v1145, %v1146
      %v1148 = vrot.slane %v1147, 4
      %v1149 = vadd.f32 %v1147, %v1148
      %v1150 = vrot.slane %v1149, 2
      %v1151 = vadd.f32 %v1149, %v1150
      %v1152 = vrot.slane %v1151, 1
      %v1153 = vadd.f32 %v1151, %v1152
      %vm1154 = vcmask 1040384
      %v1155 = vsel %vm1154, %v1144, %v1153
      %vm1156 = vcmask 1041408
      %v1157 = vsel %vm1156, %v1155, 0.0
      %1158 = vst [vmem:[%s359] sm:$0xff] %v1157
      %s1159 = smul.u32 2, %s21
      %p1160 = scmp.lt.s32.totalorder %s1159, 3
      %s1161 = scalar_select %p1160, %s1159, 3
      %s1162 = smul.addr %s1161, 8
      %s1163 = scalar_lea.vmem %s7, %s1162
      %s1164 = smul.u32 2, %s21
      %p1165 = scmp.lt.s32.totalorder %s1164, 3
      %s1166 = scalar_select %p1165, %s1164, 3
      %s1167 = smul.addr %s1166, 8
      %s1168 = scalar_lea.vmem %s8, %s1167
      %p1169 = scmp.lt.s32.totalorder %s21, 1
      %s1170 = scalar_select %p1169, %s21, 1
      %s1171 = smul.addr %s1170, 8
      %s1172 = scalar_lea.vmem %s9, %s1171
      // Predicated region
      $region49: #{res_layer_forward.2} parent=47 // pred_check
        %p1173 = pneg %p191
      $region50: #{res_layer_forward.2} parent=47 // pred_check_branch
        %1175 = sbr.rel (%p1173) target = $region52
      $region51: #{res_layer_forward.2} parent=47 // pred_region
        %s1176 = smul.u32 2, %s21
      $region52: #{res_layer_forward.2} parent=47 // pred_fallthru
        _
      // Predicated region
      $region53: #{res_layer_forward.2} parent=47 // pred_check
        %p1177 = pneg %p217
      $region54: #{res_layer_forward.2} parent=47 // pred_check_branch
        %1179 = sbr.rel (%p1177) target = $region56
      $region55: #{res_layer_forward.2} parent=47 // pred_region
        %s1180 = smul.u32 2, %s21
      $region56: #{res_layer_forward.2} parent=47 // pred_fallthru
        _
      // Predicated region
      $region57: #{res_layer_forward.2} parent=47 // pred_check
        %p1181 = pneg %p243
      $region58: #{res_layer_forward.2} parent=47 // pred_check_branch
        %1183 = sbr.rel (%p1181) target = $region60
      $region59: #{res_layer_forward.2} parent=47 // pred_region
        _
      $region60: #{res_layer_forward.2} parent=47 // pred_fallthru
        _
    $region48: #{res_layer_forward.2} parent=5 // pred_fallthru
      _
    %p1184 = scmp.le.s32.totalorder 2, %s16
    // Predicated region
    $region61: #{res_layer_forward.2} parent=5 // pred_check
      %p1185 = pneg %p1184
    $region62: #{res_layer_forward.2} parent=5 // pred_check_branch
      %1187 = sbr.rel (%p1185) target = $region64
    $region63: #{res_layer_forward.2} parent=5 // pred_region
      %s1188 = ssub.s32 %s16, 2
      // Predicated region
      $region65: #{res_layer_forward.2} parent=63 // pred_check
        %p1189 = pneg %p197
      $region66: #{res_layer_forward.2} parent=63 // pred_check_branch
        %1191 = sbr.rel (%p1189) target = $region68
      $region67: #{res_layer_forward.2} parent=63 // pred_region
        %s1192 = smul.u32 2, %s22
        %p1193 = scmp.lt.s32.totalorder %s1192, 3
        %s1194 = scalar_select %p1193, %s1192, 3
        %s1195 = smul.addr %s1194, 8
        %s1196 = scalar_lea.vmem %s7, %s1195
      $region68: #{res_layer_forward.2} parent=63 // pred_fallthru
        _
      // Predicated region
      $region69: #{res_layer_forward.2} parent=63 // pred_check
        %p1197 = pneg %p223
      $region70: #{res_layer_forward.2} parent=63 // pred_check_branch
        %1199 = sbr.rel (%p1197) target = $region72
      $region71: #{res_layer_forward.2} parent=63 // pred_region
        %s1200 = smul.u32 2, %s22
        %p1201 = scmp.lt.s32.totalorder %s1200, 3
        %s1202 = scalar_select %p1201, %s1200, 3
        %s1203 = smul.addr %s1202, 8
        %s1204 = scalar_lea.vmem %s8, %s1203
      $region72: #{res_layer_forward.2} parent=63 // pred_fallthru
        _
      // Predicated region
      $region73: #{res_layer_forward.2} parent=63 // pred_check
        %p1205 = pneg %p249
      $region74: #{res_layer_forward.2} parent=63 // pred_check_branch
        %1207 = sbr.rel (%p1205) target = $region76
      $region75: #{res_layer_forward.2} parent=63 // pred_region
        %p1208 = scmp.lt.s32.totalorder %s22, 1
        %s1209 = scalar_select %p1208, %s22, 1
        %s1210 = smul.addr %s1209, 8
        %s1211 = scalar_lea.vmem %s9, %s1210
      $region76: #{res_layer_forward.2} parent=63 // pred_fallthru
        _
    $region64: #{res_layer_forward.2} parent=5 // pred_fallthru
      _
  $region6: #{res_layer_forward.2} parent=0 // loop_footer
    %s20 = sadd.s32 1, %s16
  $region7: #{res_layer_forward.2} parent=0 // loop_footer_branch
    %15 = sbr.rel target = $region3
  $region8: #{res_layer_forward.2} parent=0 // loop_exit
    _

</llo_original>
